<compile_context>
chip_gen: v6e
topology: v6e:2x2x1
jax: 0.10.0
libtpu: 0.0.40
codegen_flags: <defaults>
</compile_context>

<pallas_src>
import functools

import jax
import jax.numpy as jnp
import numpy as np
from jax import lax
from jax.experimental import pallas as pl
from jax.experimental.pallas import tpu as pltpu


def _bf16r(x):
    """Round to bf16-representable f32 (keeps MXU matmul paths bit-friendly)."""
    return jnp.asarray(x, jnp.float32).astype(jnp.bfloat16).astype(jnp.float32)


# ---------------------------------------------------------------------------
# Pallas kernel: one grid step == one batch element; the whole block is fused.
# All activations are (channels, H*W): channels on sublanes, spatial on lanes.
# ---------------------------------------------------------------------------
def _sesp_kernel(H, W, k, n,
                 x_ref, w_proj_ref, dwm_ref, w_exp_ref, vec_ref, out_ref):
    HW = H * W

    # ---- proj_1x1 (CBR): grouped 1x1 conv as a block-diagonal bf16 MXU
    #      matmul (f32 accumulation).  BN scale is folded into the weights
    #      host-side, so only the shift + PReLU remain here.
    y = jnp.dot(w_proj_ref[...], x_ref[0].astype(jnp.bfloat16),
                preferred_element_type=jnp.float32)              # (n, HW)
    y = y + vec_ref[:n, 0:1]                                     # p_shift
    out1 = jnp.where(y > 0, y, y * vec_ref[:n, 1:2])             # p_alpha (PReLU)

    # ---- dilation-1 taps of out1: hoisted once, shared by all k branches.
    #      Border masks live inside the weight tables, so taps are plain
    #      XLU lane-rolls of the flat spatial axis.
    taps1 = []
    for t in range(9):
        if t == 4:
            taps1.append(out1)                                   # centre: no roll
        else:
            off = (t // 3 - 1) * W + (t % 3 - 1)
            taps1.append(pltpu.roll(out1, (-off) % HW, axis=1))

    # ---- per branch:
    #        * cumulative dilation-1 depth-wise conv (replaces hierarchical
    #          `+ prev` chain, branches are fully independent),
    #        * dilation-2 depth-wise conv (br-BN scale folded into weights),
    #        * br-BN shift + PReLU, cast to bf16 as produced.
    vouts = []
    for i in range(k):
        o = taps1[0] * dwm_ref[0, i, 0]
        for t in range(1, 9):
            o = o + taps1[t] * dwm_ref[0, i, t]

        v = o * dwm_ref[1, i, 4]                                 # dil-2 centre tap
        for t in range(9):
            if t == 4:
                continue
            off = ((t // 3 - 1) * W + (t % 3 - 1)) * 2
            v = v + pltpu.roll(o, (-off) % HW, axis=1) * dwm_ref[1, i, t]

        v = v + vec_ref[i * n:(i + 1) * n, 2:3]                  # br_shift
        v = jnp.where(v > 0, v, v * vec_ref[i * n:(i + 1) * n, 3:4])  # br_alpha
        vouts.append(v.astype(jnp.bfloat16))

    # ---- grouped conv_1x1_exp (CB): the k per-group matmuls fused into one
    #      block-diagonal bf16 MXU matmul over the bf16 channel-concat.
    cat = jnp.concatenate(vouts, axis=0)                         # (cout, HW) bf16
    z = jnp.dot(w_exp_ref[...], cat, preferred_element_type=jnp.float32)
    z = z * vec_ref[:, 4:5] + vec_ref[:, 5:6]                    # exp BatchNorm

    # ---- residual (stride == 1 and nOut == nIn) + module_act (PReLU)
    z = z + x_ref[0]
    out_ref[0] = jnp.where(z > 0, z, z * vec_ref[:, 6:7])        # m_alpha


def _tap_masks(H, W, d):
    """0/1 masks (9, H*W): tap (dy,dx)*d valid at flat position p."""
    HW = H * W
    yy, xx = np.divmod(np.arange(HW), W)
    m = np.zeros((9, HW), np.float32)
    for t in range(9):
        dy = (t // 3 - 1) * d
        dx = (t % 3 - 1) * d
        ok = (yy + dy >= 0) & (yy + dy < H) & (xx + dx >= 0) & (xx + dx < W)
        m[t] = ok.astype(np.float32)
    return m


@functools.partial(jax.jit, static_argnames=("k",))
def sesp_forward(x_nchw, p, *, k):
    """EESP-core forward. Input / output are NCHW (PyTorch convention)."""
    B, cin, H, W = x_nchw.shape
    cout = p["vec"].shape[0]
    n = cout // k
    HW = H * W
    assert cin == cout, "residual branch requires nIn == nOut (stride == 1)"
    assert p["dwm"].shape[-1] == HW, "depth-wise tables packed for a different H*W"

    x = x_nchw.reshape(B, cin, HW)       # pure reshape of NCHW (no transpose)

    kernel = functools.partial(_sesp_kernel, H, W, k, n)
    params = (p["w_proj"], p["dwm"], p["w_exp"], p["vec"])

    def full(arr):
        nd = arr.ndim
        return pl.BlockSpec(arr.shape, lambda b, _nd=nd: (0,) * _nd)

    grid_spec = pltpu.PrefetchScalarGridSpec(
        num_scalar_prefetch=0,
        grid=(B,),
        in_specs=[pl.BlockSpec((1, cin, HW), lambda b: (b, 0, 0))] +
                 [full(a) for a in params],
        out_specs=pl.BlockSpec((1, cout, HW), lambda b: (b, 0, 0)),
    )

    out = pl.pallas_call(
        kernel,
        out_shape=jax.ShapeDtypeStruct((B, cout, HW), jnp.float32),
        grid_spec=grid_spec,
        compiler_params=pltpu.CompilerParams(
            dimension_semantics=("parallel",)),   # batch-parallel (2 TCs on v7x)
    )(x, *params)

    return out.reshape(B, cout, H, W)             # back to NCHW (free reshape)


# ---------------------------------------------------------------------------
# Deterministic synthetic parameters (PyTorch shapes + kernel-side packing).
# ---------------------------------------------------------------------------
def make_params(key, cin, cout, k, H, W, eps=1e-5):
    n = cout // k                 # channels per branch
    assert n * k == cout and cin % k == 0
    cin_g = cin // k              # input channels per group of proj_1x1
    cout_g = n // k               # output channels per group of proj_1x1
    assert cout_g * k == n

    ks = jax.random.split(key, 10)
    rnd = lambda kk, shape, s: _bf16r(s * jax.random.normal(kk, shape, jnp.float32))

    # --- PyTorch-shaped parameters ----------------------------------------
    w_proj = rnd(ks[0], (n, cin_g), 1.0 / np.sqrt(cin_g))   # Conv2d(nIn, n, 1, groups=k)
    dw1 = rnd(ks[1], (k, n, 3, 3), 1.0 / 9.0)               # spp_dw    (dilation 1)
    dw2 = rnd(ks[2], (k, n, 3, 3), 1.0 / 9.0)               # spp_dw_v2 (dilation 2)
    w_exp = rnd(ks[3], (cout, n), 1.0 / np.sqrt(n))         # Conv2d(nOut, nOut, 1, groups=k)

    def folded_bn(kk, c):
        k1, k2, k3, k4 = jax.random.split(kk, 4)
        gamma = _bf16r(1.0 + 0.1 * jax.random.normal(k1, (c,)))
        beta = _bf16r(0.1 * jax.random.normal(k2, (c,)))
        mean = _bf16r(0.1 * jax.random.normal(k3, (c,)))
        var = _bf16r(1.0 + 0.5 * jax.random.uniform(k4, (c,)))
        scale = gamma / jnp.sqrt(var + eps)
        shift = beta - mean * scale
        return scale.astype(jnp.float32), shift.astype(jnp.float32)

    p_scale, p_shift = folded_bn(ks[4], n)          # CBR BatchNorm
    br_scale, br_shift = folded_bn(ks[5], cout)     # BR  BatchNorm
    e_scale, e_shift = folded_bn(ks[6], cout)       # CB  BatchNorm

    p_alpha = _bf16r(0.25 + 0.05 * jax.random.normal(ks[7], (n,)))
    br_alpha = _bf16r(0.25 + 0.05 * jax.random.normal(ks[8], (cout,)))
    m_alpha = _bf16r(0.25 + 0.05 * jax.random.normal(ks[9], (cout,)))

    raw = dict(w_proj=w_proj, dw1=dw1, dw2=dw2, w_exp=w_exp,
               p_scale=p_scale, p_shift=p_shift, p_alpha=p_alpha,
               br_scale=br_scale, br_shift=br_shift, br_alpha=br_alpha,
               e_scale=e_scale, e_shift=e_shift, m_alpha=m_alpha)

    # --- kernel-side packing (channels-first, spatial-on-lanes layout) -----
    # grouped 1x1 proj -> dense block-diagonal (n, cin) matrix with the CBR
    # BN scale folded in (f32 fold, then one bf16 cast for the MXU).
    wpd = np.zeros((n, cin), np.float32)
    wp = np.asarray(w_proj)
    for o in range(n):
        g = o // cout_g
        wpd[o, g * cin_g:(g + 1) * cin_g] = wp[o]
    wpd *= np.asarray(p_scale).reshape(n, 1)

    # depth-wise masked-weight tables (2, k, 9, n, HW):
    #   dwm[0,i,t,c,p] = mask_d1[t,p] * sum_{j<=i} dw1[j,c,t]        (cumulative)
    #   dwm[1,i,t,c,p] = mask_d2[t,p] * dw2[i,c,t] * br_scale[i*n+c] (BN folded)
    HW = H * W
    w1 = np.transpose(np.cumsum(np.asarray(dw1), axis=0).reshape(k, n, 9), (0, 2, 1))
    w2 = np.transpose(np.asarray(dw2).reshape(k, n, 9), (0, 2, 1))
    w2 = w2 * np.asarray(br_scale).reshape(k, n)[:, None, :]
    m1 = _tap_masks(H, W, 1)
    m2 = _tap_masks(H, W, 2)
    dwm = np.stack([w1[..., None] * m1[None, :, None, :],
                    w2[..., None] * m2[None, :, None, :]], axis=0)

    # grouped 1x1 expansion -> block-diagonal (cout, cout) matrix, bf16
    wee = np.zeros((cout, cout), np.float32)
    we = np.asarray(w_exp)
    for o in range(cout):
        g = o // n
        wee[o, g * n:(g + 1) * n] = we[o]

    # per-channel vectors coalesced into one (cout, 8) table:
    # cols = [p_shift, p_alpha, br_shift, br_alpha, e_scale, e_shift, m_alpha, 0]
    vec = np.zeros((cout, 8), np.float32)
    vec[:n, 0] = np.asarray(p_shift)
    vec[:n, 1] = np.asarray(p_alpha)
    vec[:, 2] = np.asarray(br_shift)
    vec[:, 3] = np.asarray(br_alpha)
    vec[:, 4] = np.asarray(e_scale)
    vec[:, 5] = np.asarray(e_shift)
    vec[:, 6] = np.asarray(m_alpha)

    packed = dict(
        w_proj=jnp.asarray(wpd, jnp.bfloat16),
        dwm=jnp.asarray(dwm, jnp.float32),
        w_exp=jnp.asarray(wee, jnp.bfloat16),
        vec=jnp.asarray(vec, jnp.float32),
    )
    return raw, packed


# ---------------------------------------------------------------------------
# Plain-JAX reference (NCHW, lax convolutions) used to validate the kernel.
# ---------------------------------------------------------------------------
def ref_sesp(x, raw, k):
    cout = raw["e_scale"].shape[0]
    n = cout // k
    dn = ("NCHW", "OIHW", "NCHW")
    hi = lax.Precision.HIGHEST

    def bn(y, scale, shift):
        return y * scale[None, :, None, None] + shift[None, :, None, None]

    def prelu(y, a):
        return jnp.where(y > 0, y, y * a[None, :, None, None])

    y = lax.conv_general_dilated(x, raw["w_proj"][:, :, None, None], (1, 1), "VALID",
                                 dimension_numbers=dn, feature_group_count=k,
                                 precision=hi)
    out1 = prelu(bn(y, raw["p_scale"], raw["p_shift"]), raw["p_alpha"])

    def dw(z, w, d):
        return lax.conv_general_dilated(z, w[:, None, :, :], (1, 1),
                                        [(d, d), (d, d)], rhs_dilation=(d, d),
                                        dimension_numbers=dn,
                                        feature_group_count=n, precision=hi)

    outs, prev = [], None
    for i in range(k):
        o = dw(out1, raw["dw1"][i], 1)
        if prev is not None:
            o = o + prev
        outs.append(o)
        prev = o
    vouts = [dw(outs[i], raw["dw2"][i], 2) for i in range(k)]
    cat = jnp.concatenate(vouts, axis=1)
    y = prelu(bn(cat, raw["br_scale"], raw["br_shift"]), raw["br_alpha"])
    y = lax.conv_general_dilated(y, raw["w_exp"][:, :, None, None], (1, 1), "VALID",
                                 dimension_numbers=dn, feature_group_count=k,
                                 precision=hi)
    y = bn(y, raw["e_scale"], raw["e_shift"])
    y = y + x                          # expanded.size() == input.size()
    return prelu(y, raw["m_alpha"])


if __name__ == "__main__":
    B, C, H, W = 2, 32, 16, 16         # NCHW; nIn == nOut == 32, k == 4 -> n == 8
    K = 4
    key = jax.random.PRNGKey(0)
    kx, kp = jax.random.split(key)
    x = _bf16r(jax.random.normal(kx, (B, C, H, W), jnp.float32))
    raw, packed = make_params(kp, C, C, K, H, W)

    out = sesp_forward(x, packed, k=K)
    out = jax.block_until_ready(out)

    ref = jax.block_until_ready(ref_sesp(x, raw, K))
    assert out.shape == ref.shape == (B, C, H, W), (out.shape, ref.shape)
    err = float(jnp.max(jnp.abs(out - ref)))
    assert err < 5e-2, f"kernel does not match reference: max abs err = {err}"
    print("KERNEL_OK")
</pallas_src>

<mosaic_0001>
module attributes {stable_mosaic.version = 11 : i64} {
  func.func @_sesp_kernel(%arg0: i32, %arg1: memref<1x32x256xf32, #tpu.memory_space<vmem>>, %arg2: memref<8x32xbf16, #tpu.memory_space<vmem>>, %arg3: memref<2x4x9x8x256xf32, #tpu.memory_space<vmem>>, %arg4: memref<32x32xbf16, #tpu.memory_space<vmem>>, %arg5: memref<32x8xf32, #tpu.memory_space<vmem>>, %arg6: memref<1x32x256xf32, #tpu.memory_space<vmem>>) attributes {dimension_semantics = [#tpu.dimension_semantics<parallel>], iteration_bounds = array<i64: 2>, scalar_prefetch = 0 : i64, scratch_operands = 0 : i64, tpu.core_type = #tpu.core_type<tc>, window_params = [{transform_indices = @transform_0, window_bounds = array<i64: 1, 32, 256>}, {pipeline_mode = #tpu.pipeline_mode<synchronous>, transform_indices = @transform_1, window_bounds = array<i64: 8, 32>}, {pipeline_mode = #tpu.pipeline_mode<synchronous>, transform_indices = @transform_2, window_bounds = array<i64: 2, 4, 9, 8, 256>}, {pipeline_mode = #tpu.pipeline_mode<synchronous>, transform_indices = @transform_3, window_bounds = array<i64: 32, 32>}, {pipeline_mode = #tpu.pipeline_mode<synchronous>, transform_indices = @transform_4, window_bounds = array<i64: 32, 8>}, {transform_indices = @transform_5, window_bounds = array<i64: 1, 32, 256>}]} {
    %c0 = arith.constant 0 : index
    %c0_0 = arith.constant 0 : index
    %0 = vector.load %arg2[%c0, %c0_0] : memref<8x32xbf16, #tpu.memory_space<vmem>>, vector<8x32xbf16>
    %c0_1 = arith.constant 0 : index
    %c0_2 = arith.constant 0 : index
    %c0_3 = arith.constant 0 : index
    %1 = vector.load %arg1[%c0_1, %c0_2, %c0_3] : memref<1x32x256xf32, #tpu.memory_space<vmem>>, vector<1x32x256xf32>
    %2 = vector.shape_cast %1 : vector<1x32x256xf32> to vector<32x256xf32>
    %3 = arith.truncf %2 : vector<32x256xf32> to vector<32x256xbf16>
    %cst = arith.constant dense<0.000000e+00> : vector<8x256xf32>
    %4 = tpu.matmul %0, %3, %cst {dimension_numbers = #tpu.dot_dimension_numbers<[1], [0], [0], [1], [0, 0, 1, 1], [], []>} : vector<8x32xbf16>, vector<32x256xbf16>, vector<8x256xf32> -> vector<8x256xf32>
    %c0_4 = arith.constant 0 : index
    %c0_5 = arith.constant 0 : index
    %5 = vector.load %arg5[%c0_4, %c0_5] : memref<32x8xf32, #tpu.memory_space<vmem>>, vector<8x1xf32>
    %6 = vector.broadcast %5 : vector<8x1xf32> to vector<8x256xf32>
    %7 = arith.addf %4, %6 : vector<8x256xf32>
    %cst_6 = arith.constant 0.000000e+00 : f32
    %8 = vector.broadcast %cst_6 : f32 to vector<8x256xf32>
    %9 = arith.cmpf ogt, %7, %8 : vector<8x256xf32>
    %c0_7 = arith.constant 0 : index
    %c1 = arith.constant 1 : index
    %10 = vector.load %arg5[%c0_7, %c1] : memref<32x8xf32, #tpu.memory_space<vmem>>, vector<8x1xf32>
    %11 = vector.broadcast %10 : vector<8x1xf32> to vector<8x256xf32>
    %12 = arith.mulf %7, %11 : vector<8x256xf32>
    %13 = arith.select %9, %7, %12 : vector<8x256xi1>, vector<8x256xf32>
    %c17_i32 = arith.constant 17 : i32
    %14 = tpu.dynamic_rotate %13 by %c17_i32 dim 1 : vector<8x256xf32>, i32 -> vector<8x256xf32>
    %c16_i32 = arith.constant 16 : i32
    %15 = tpu.dynamic_rotate %13 by %c16_i32 dim 1 : vector<8x256xf32>, i32 -> vector<8x256xf32>
    %c15_i32 = arith.constant 15 : i32
    %16 = tpu.dynamic_rotate %13 by %c15_i32 dim 1 : vector<8x256xf32>, i32 -> vector<8x256xf32>
    %c1_i32 = arith.constant 1 : i32
    %17 = tpu.dynamic_rotate %13 by %c1_i32 dim 1 : vector<8x256xf32>, i32 -> vector<8x256xf32>
    %c255_i32 = arith.constant 255 : i32
    %18 = tpu.dynamic_rotate %13 by %c255_i32 dim 1 : vector<8x256xf32>, i32 -> vector<8x256xf32>
    %c241_i32 = arith.constant 241 : i32
    %19 = tpu.dynamic_rotate %13 by %c241_i32 dim 1 : vector<8x256xf32>, i32 -> vector<8x256xf32>
    %c240_i32 = arith.constant 240 : i32
    %20 = tpu.dynamic_rotate %13 by %c240_i32 dim 1 : vector<8x256xf32>, i32 -> vector<8x256xf32>
    %c239_i32 = arith.constant 239 : i32
    %21 = tpu.dynamic_rotate %13 by %c239_i32 dim 1 : vector<8x256xf32>, i32 -> vector<8x256xf32>
    %c0_8 = arith.constant 0 : index
    %c0_9 = arith.constant 0 : index
    %c0_10 = arith.constant 0 : index
    %c0_11 = arith.constant 0 : index
    %c0_12 = arith.constant 0 : index
    %22 = vector.load %arg3[%c0_8, %c0_9, %c0_10, %c0_11, %c0_12] : memref<2x4x9x8x256xf32, #tpu.memory_space<vmem>>, vector<1x1x1x8x256xf32>
    %23 = vector.shape_cast %22 : vector<1x1x1x8x256xf32> to vector<8x256xf32>
    %24 = arith.mulf %14, %23 : vector<8x256xf32>
    %c0_13 = arith.constant 0 : index
    %c0_14 = arith.constant 0 : index
    %c1_15 = arith.constant 1 : index
    %c0_16 = arith.constant 0 : index
    %c0_17 = arith.constant 0 : index
    %25 = vector.load %arg3[%c0_13, %c0_14, %c1_15, %c0_16, %c0_17] : memref<2x4x9x8x256xf32, #tpu.memory_space<vmem>>, vector<1x1x1x8x256xf32>
    %26 = vector.shape_cast %25 : vector<1x1x1x8x256xf32> to vector<8x256xf32>
    %27 = arith.mulf %15, %26 : vector<8x256xf32>
    %28 = arith.addf %24, %27 : vector<8x256xf32>
    %c0_18 = arith.constant 0 : index
    %c0_19 = arith.constant 0 : index
    %c2 = arith.constant 2 : index
    %c0_20 = arith.constant 0 : index
    %c0_21 = arith.constant 0 : index
    %29 = vector.load %arg3[%c0_18, %c0_19, %c2, %c0_20, %c0_21] : memref<2x4x9x8x256xf32, #tpu.memory_space<vmem>>, vector<1x1x1x8x256xf32>
    %30 = vector.shape_cast %29 : vector<1x1x1x8x256xf32> to vector<8x256xf32>
    %31 = arith.mulf %16, %30 : vector<8x256xf32>
    %32 = arith.addf %28, %31 : vector<8x256xf32>
    %c0_22 = arith.constant 0 : index
    %c0_23 = arith.constant 0 : index
    %c3 = arith.constant 3 : index
    %c0_24 = arith.constant 0 : index
    %c0_25 = arith.constant 0 : index
    %33 = vector.load %arg3[%c0_22, %c0_23, %c3, %c0_24, %c0_25] : memref<2x4x9x8x256xf32, #tpu.memory_space<vmem>>, vector<1x1x1x8x256xf32>
    %34 = vector.shape_cast %33 : vector<1x1x1x8x256xf32> to vector<8x256xf32>
    %35 = arith.mulf %17, %34 : vector<8x256xf32>
    %36 = arith.addf %32, %35 : vector<8x256xf32>
    %c0_26 = arith.constant 0 : index
    %c0_27 = arith.constant 0 : index
    %c4 = arith.constant 4 : index
    %c0_28 = arith.constant 0 : index
    %c0_29 = arith.constant 0 : index
    %37 = vector.load %arg3[%c0_26, %c0_27, %c4, %c0_28, %c0_29] : memref<2x4x9x8x256xf32, #tpu.memory_space<vmem>>, vector<1x1x1x8x256xf32>
    %38 = vector.shape_cast %37 : vector<1x1x1x8x256xf32> to vector<8x256xf32>
    %39 = arith.mulf %13, %38 : vector<8x256xf32>
    %40 = arith.addf %36, %39 : vector<8x256xf32>
    %c0_30 = arith.constant 0 : index
    %c0_31 = arith.constant 0 : index
    %c5 = arith.constant 5 : index
    %c0_32 = arith.constant 0 : index
    %c0_33 = arith.constant 0 : index
    %41 = vector.load %arg3[%c0_30, %c0_31, %c5, %c0_32, %c0_33] : memref<2x4x9x8x256xf32, #tpu.memory_space<vmem>>, vector<1x1x1x8x256xf32>
    %42 = vector.shape_cast %41 : vector<1x1x1x8x256xf32> to vector<8x256xf32>
    %43 = arith.mulf %18, %42 : vector<8x256xf32>
    %44 = arith.addf %40, %43 : vector<8x256xf32>
    %c0_34 = arith.constant 0 : index
    %c0_35 = arith.constant 0 : index
    %c6 = arith.constant 6 : index
    %c0_36 = arith.constant 0 : index
    %c0_37 = arith.constant 0 : index
    %45 = vector.load %arg3[%c0_34, %c0_35, %c6, %c0_36, %c0_37] : memref<2x4x9x8x256xf32, #tpu.memory_space<vmem>>, vector<1x1x1x8x256xf32>
    %46 = vector.shape_cast %45 : vector<1x1x1x8x256xf32> to vector<8x256xf32>
    %47 = arith.mulf %19, %46 : vector<8x256xf32>
    %48 = arith.addf %44, %47 : vector<8x256xf32>
    %c0_38 = arith.constant 0 : index
    %c0_39 = arith.constant 0 : index
    %c7 = arith.constant 7 : index
    %c0_40 = arith.constant 0 : index
    %c0_41 = arith.constant 0 : index
    %49 = vector.load %arg3[%c0_38, %c0_39, %c7, %c0_40, %c0_41] : memref<2x4x9x8x256xf32, #tpu.memory_space<vmem>>, vector<1x1x1x8x256xf32>
    %50 = vector.shape_cast %49 : vector<1x1x1x8x256xf32> to vector<8x256xf32>
    %51 = arith.mulf %20, %50 : vector<8x256xf32>
    %52 = arith.addf %48, %51 : vector<8x256xf32>
    %c0_42 = arith.constant 0 : index
    %c0_43 = arith.constant 0 : index
    %c8 = arith.constant 8 : index
    %c0_44 = arith.constant 0 : index
    %c0_45 = arith.constant 0 : index
    %53 = vector.load %arg3[%c0_42, %c0_43, %c8, %c0_44, %c0_45] : memref<2x4x9x8x256xf32, #tpu.memory_space<vmem>>, vector<1x1x1x8x256xf32>
    %54 = vector.shape_cast %53 : vector<1x1x1x8x256xf32> to vector<8x256xf32>
    %55 = arith.mulf %21, %54 : vector<8x256xf32>
    %56 = arith.addf %52, %55 : vector<8x256xf32>
    %c1_46 = arith.constant 1 : index
    %c0_47 = arith.constant 0 : index
    %c4_48 = arith.constant 4 : index
    %c0_49 = arith.constant 0 : index
    %c0_50 = arith.constant 0 : index
    %57 = vector.load %arg3[%c1_46, %c0_47, %c4_48, %c0_49, %c0_50] : memref<2x4x9x8x256xf32, #tpu.memory_space<vmem>>, vector<1x1x1x8x256xf32>
    %58 = vector.shape_cast %57 : vector<1x1x1x8x256xf32> to vector<8x256xf32>
    %59 = arith.mulf %56, %58 : vector<8x256xf32>
    %c34_i32 = arith.constant 34 : i32
    %60 = tpu.dynamic_rotate %56 by %c34_i32 dim 1 : vector<8x256xf32>, i32 -> vector<8x256xf32>
    %c1_51 = arith.constant 1 : index
    %c0_52 = arith.constant 0 : index
    %c0_53 = arith.constant 0 : index
    %c0_54 = arith.constant 0 : index
    %c0_55 = arith.constant 0 : index
    %61 = vector.load %arg3[%c1_51, %c0_52, %c0_53, %c0_54, %c0_55] : memref<2x4x9x8x256xf32, #tpu.memory_space<vmem>>, vector<1x1x1x8x256xf32>
    %62 = vector.shape_cast %61 : vector<1x1x1x8x256xf32> to vector<8x256xf32>
    %63 = arith.mulf %60, %62 : vector<8x256xf32>
    %64 = arith.addf %59, %63 : vector<8x256xf32>
    %c32_i32 = arith.constant 32 : i32
    %65 = tpu.dynamic_rotate %56 by %c32_i32 dim 1 : vector<8x256xf32>, i32 -> vector<8x256xf32>
    %c1_56 = arith.constant 1 : index
    %c0_57 = arith.constant 0 : index
    %c1_58 = arith.constant 1 : index
    %c0_59 = arith.constant 0 : index
    %c0_60 = arith.constant 0 : index
    %66 = vector.load %arg3[%c1_56, %c0_57, %c1_58, %c0_59, %c0_60] : memref<2x4x9x8x256xf32, #tpu.memory_space<vmem>>, vector<1x1x1x8x256xf32>
    %67 = vector.shape_cast %66 : vector<1x1x1x8x256xf32> to vector<8x256xf32>
    %68 = arith.mulf %65, %67 : vector<8x256xf32>
    %69 = arith.addf %64, %68 : vector<8x256xf32>
    %c30_i32 = arith.constant 30 : i32
    %70 = tpu.dynamic_rotate %56 by %c30_i32 dim 1 : vector<8x256xf32>, i32 -> vector<8x256xf32>
    %c1_61 = arith.constant 1 : index
    %c0_62 = arith.constant 0 : index
    %c2_63 = arith.constant 2 : index
    %c0_64 = arith.constant 0 : index
    %c0_65 = arith.constant 0 : index
    %71 = vector.load %arg3[%c1_61, %c0_62, %c2_63, %c0_64, %c0_65] : memref<2x4x9x8x256xf32, #tpu.memory_space<vmem>>, vector<1x1x1x8x256xf32>
    %72 = vector.shape_cast %71 : vector<1x1x1x8x256xf32> to vector<8x256xf32>
    %73 = arith.mulf %70, %72 : vector<8x256xf32>
    %74 = arith.addf %69, %73 : vector<8x256xf32>
    %c2_i32 = arith.constant 2 : i32
    %75 = tpu.dynamic_rotate %56 by %c2_i32 dim 1 : vector<8x256xf32>, i32 -> vector<8x256xf32>
    %c1_66 = arith.constant 1 : index
    %c0_67 = arith.constant 0 : index
    %c3_68 = arith.constant 3 : index
    %c0_69 = arith.constant 0 : index
    %c0_70 = arith.constant 0 : index
    %76 = vector.load %arg3[%c1_66, %c0_67, %c3_68, %c0_69, %c0_70] : memref<2x4x9x8x256xf32, #tpu.memory_space<vmem>>, vector<1x1x1x8x256xf32>
    %77 = vector.shape_cast %76 : vector<1x1x1x8x256xf32> to vector<8x256xf32>
    %78 = arith.mulf %75, %77 : vector<8x256xf32>
    %79 = arith.addf %74, %78 : vector<8x256xf32>
    %c254_i32 = arith.constant 254 : i32
    %80 = tpu.dynamic_rotate %56 by %c254_i32 dim 1 : vector<8x256xf32>, i32 -> vector<8x256xf32>
    %c1_71 = arith.constant 1 : index
    %c0_72 = arith.constant 0 : index
    %c5_73 = arith.constant 5 : index
    %c0_74 = arith.constant 0 : index
    %c0_75 = arith.constant 0 : index
    %81 = vector.load %arg3[%c1_71, %c0_72, %c5_73, %c0_74, %c0_75] : memref<2x4x9x8x256xf32, #tpu.memory_space<vmem>>, vector<1x1x1x8x256xf32>
    %82 = vector.shape_cast %81 : vector<1x1x1x8x256xf32> to vector<8x256xf32>
    %83 = arith.mulf %80, %82 : vector<8x256xf32>
    %84 = arith.addf %79, %83 : vector<8x256xf32>
    %c226_i32 = arith.constant 226 : i32
    %85 = tpu.dynamic_rotate %56 by %c226_i32 dim 1 : vector<8x256xf32>, i32 -> vector<8x256xf32>
    %c1_76 = arith.constant 1 : index
    %c0_77 = arith.constant 0 : index
    %c6_78 = arith.constant 6 : index
    %c0_79 = arith.constant 0 : index
    %c0_80 = arith.constant 0 : index
    %86 = vector.load %arg3[%c1_76, %c0_77, %c6_78, %c0_79, %c0_80] : memref<2x4x9x8x256xf32, #tpu.memory_space<vmem>>, vector<1x1x1x8x256xf32>
    %87 = vector.shape_cast %86 : vector<1x1x1x8x256xf32> to vector<8x256xf32>
    %88 = arith.mulf %85, %87 : vector<8x256xf32>
    %89 = arith.addf %84, %88 : vector<8x256xf32>
    %c224_i32 = arith.constant 224 : i32
    %90 = tpu.dynamic_rotate %56 by %c224_i32 dim 1 : vector<8x256xf32>, i32 -> vector<8x256xf32>
    %c1_81 = arith.constant 1 : index
    %c0_82 = arith.constant 0 : index
    %c7_83 = arith.constant 7 : index
    %c0_84 = arith.constant 0 : index
    %c0_85 = arith.constant 0 : index
    %91 = vector.load %arg3[%c1_81, %c0_82, %c7_83, %c0_84, %c0_85] : memref<2x4x9x8x256xf32, #tpu.memory_space<vmem>>, vector<1x1x1x8x256xf32>
    %92 = vector.shape_cast %91 : vector<1x1x1x8x256xf32> to vector<8x256xf32>
    %93 = arith.mulf %90, %92 : vector<8x256xf32>
    %94 = arith.addf %89, %93 : vector<8x256xf32>
    %c222_i32 = arith.constant 222 : i32
    %95 = tpu.dynamic_rotate %56 by %c222_i32 dim 1 : vector<8x256xf32>, i32 -> vector<8x256xf32>
    %c1_86 = arith.constant 1 : index
    %c0_87 = arith.constant 0 : index
    %c8_88 = arith.constant 8 : index
    %c0_89 = arith.constant 0 : index
    %c0_90 = arith.constant 0 : index
    %96 = vector.load %arg3[%c1_86, %c0_87, %c8_88, %c0_89, %c0_90] : memref<2x4x9x8x256xf32, #tpu.memory_space<vmem>>, vector<1x1x1x8x256xf32>
    %97 = vector.shape_cast %96 : vector<1x1x1x8x256xf32> to vector<8x256xf32>
    %98 = arith.mulf %95, %97 : vector<8x256xf32>
    %99 = arith.addf %94, %98 : vector<8x256xf32>
    %c0_91 = arith.constant 0 : index
    %c2_92 = arith.constant 2 : index
    %100 = vector.load %arg5[%c0_91, %c2_92] : memref<32x8xf32, #tpu.memory_space<vmem>>, vector<8x1xf32>
    %101 = vector.broadcast %100 : vector<8x1xf32> to vector<8x256xf32>
    %102 = arith.addf %99, %101 : vector<8x256xf32>
    %cst_93 = arith.constant 0.000000e+00 : f32
    %103 = vector.broadcast %cst_93 : f32 to vector<8x256xf32>
    %104 = arith.cmpf ogt, %102, %103 : vector<8x256xf32>
    %c0_94 = arith.constant 0 : index
    %c3_95 = arith.constant 3 : index
    %105 = vector.load %arg5[%c0_94, %c3_95] : memref<32x8xf32, #tpu.memory_space<vmem>>, vector<8x1xf32>
    %106 = vector.broadcast %105 : vector<8x1xf32> to vector<8x256xf32>
    %107 = arith.mulf %102, %106 : vector<8x256xf32>
    %108 = arith.select %104, %102, %107 : vector<8x256xi1>, vector<8x256xf32>
    %109 = arith.truncf %108 : vector<8x256xf32> to vector<8x256xbf16>
    %c0_96 = arith.constant 0 : index
    %c1_97 = arith.constant 1 : index
    %c0_98 = arith.constant 0 : index
    %c0_99 = arith.constant 0 : index
    %c0_100 = arith.constant 0 : index
    %110 = vector.load %arg3[%c0_96, %c1_97, %c0_98, %c0_99, %c0_100] : memref<2x4x9x8x256xf32, #tpu.memory_space<vmem>>, vector<1x1x1x8x256xf32>
    %111 = vector.shape_cast %110 : vector<1x1x1x8x256xf32> to vector<8x256xf32>
    %112 = arith.mulf %14, %111 : vector<8x256xf32>
    %c0_101 = arith.constant 0 : index
    %c1_102 = arith.constant 1 : index
    %c1_103 = arith.constant 1 : index
    %c0_104 = arith.constant 0 : index
    %c0_105 = arith.constant 0 : index
    %113 = vector.load %arg3[%c0_101, %c1_102, %c1_103, %c0_104, %c0_105] : memref<2x4x9x8x256xf32, #tpu.memory_space<vmem>>, vector<1x1x1x8x256xf32>
    %114 = vector.shape_cast %113 : vector<1x1x1x8x256xf32> to vector<8x256xf32>
    %115 = arith.mulf %15, %114 : vector<8x256xf32>
    %116 = arith.addf %112, %115 : vector<8x256xf32>
    %c0_106 = arith.constant 0 : index
    %c1_107 = arith.constant 1 : index
    %c2_108 = arith.constant 2 : index
    %c0_109 = arith.constant 0 : index
    %c0_110 = arith.constant 0 : index
    %117 = vector.load %arg3[%c0_106, %c1_107, %c2_108, %c0_109, %c0_110] : memref<2x4x9x8x256xf32, #tpu.memory_space<vmem>>, vector<1x1x1x8x256xf32>
    %118 = vector.shape_cast %117 : vector<1x1x1x8x256xf32> to vector<8x256xf32>
    %119 = arith.mulf %16, %118 : vector<8x256xf32>
    %120 = arith.addf %116, %119 : vector<8x256xf32>
    %c0_111 = arith.constant 0 : index
    %c1_112 = arith.constant 1 : index
    %c3_113 = arith.constant 3 : index
    %c0_114 = arith.constant 0 : index
    %c0_115 = arith.constant 0 : index
    %121 = vector.load %arg3[%c0_111, %c1_112, %c3_113, %c0_114, %c0_115] : memref<2x4x9x8x256xf32, #tpu.memory_space<vmem>>, vector<1x1x1x8x256xf32>
    %122 = vector.shape_cast %121 : vector<1x1x1x8x256xf32> to vector<8x256xf32>
    %123 = arith.mulf %17, %122 : vector<8x256xf32>
    %124 = arith.addf %120, %123 : vector<8x256xf32>
    %c0_116 = arith.constant 0 : index
    %c1_117 = arith.constant 1 : index
    %c4_118 = arith.constant 4 : index
    %c0_119 = arith.constant 0 : index
    %c0_120 = arith.constant 0 : index
    %125 = vector.load %arg3[%c0_116, %c1_117, %c4_118, %c0_119, %c0_120] : memref<2x4x9x8x256xf32, #tpu.memory_space<vmem>>, vector<1x1x1x8x256xf32>
    %126 = vector.shape_cast %125 : vector<1x1x1x8x256xf32> to vector<8x256xf32>
    %127 = arith.mulf %13, %126 : vector<8x256xf32>
    %128 = arith.addf %124, %127 : vector<8x256xf32>
    %c0_121 = arith.constant 0 : index
    %c1_122 = arith.constant 1 : index
    %c5_123 = arith.constant 5 : index
    %c0_124 = arith.constant 0 : index
    %c0_125 = arith.constant 0 : index
    %129 = vector.load %arg3[%c0_121, %c1_122, %c5_123, %c0_124, %c0_125] : memref<2x4x9x8x256xf32, #tpu.memory_space<vmem>>, vector<1x1x1x8x256xf32>
    %130 = vector.shape_cast %129 : vector<1x1x1x8x256xf32> to vector<8x256xf32>
    %131 = arith.mulf %18, %130 : vector<8x256xf32>
    %132 = arith.addf %128, %131 : vector<8x256xf32>
    %c0_126 = arith.constant 0 : index
    %c1_127 = arith.constant 1 : index
    %c6_128 = arith.constant 6 : index
    %c0_129 = arith.constant 0 : index
    %c0_130 = arith.constant 0 : index
    %133 = vector.load %arg3[%c0_126, %c1_127, %c6_128, %c0_129, %c0_130] : memref<2x4x9x8x256xf32, #tpu.memory_space<vmem>>, vector<1x1x1x8x256xf32>
    %134 = vector.shape_cast %133 : vector<1x1x1x8x256xf32> to vector<8x256xf32>
    %135 = arith.mulf %19, %134 : vector<8x256xf32>
    %136 = arith.addf %132, %135 : vector<8x256xf32>
    %c0_131 = arith.constant 0 : index
    %c1_132 = arith.constant 1 : index
    %c7_133 = arith.constant 7 : index
    %c0_134 = arith.constant 0 : index
    %c0_135 = arith.constant 0 : index
    %137 = vector.load %arg3[%c0_131, %c1_132, %c7_133, %c0_134, %c0_135] : memref<2x4x9x8x256xf32, #tpu.memory_space<vmem>>, vector<1x1x1x8x256xf32>
    %138 = vector.shape_cast %137 : vector<1x1x1x8x256xf32> to vector<8x256xf32>
    %139 = arith.mulf %20, %138 : vector<8x256xf32>
    %140 = arith.addf %136, %139 : vector<8x256xf32>
    %c0_136 = arith.constant 0 : index
    %c1_137 = arith.constant 1 : index
    %c8_138 = arith.constant 8 : index
    %c0_139 = arith.constant 0 : index
    %c0_140 = arith.constant 0 : index
    %141 = vector.load %arg3[%c0_136, %c1_137, %c8_138, %c0_139, %c0_140] : memref<2x4x9x8x256xf32, #tpu.memory_space<vmem>>, vector<1x1x1x8x256xf32>
    %142 = vector.shape_cast %141 : vector<1x1x1x8x256xf32> to vector<8x256xf32>
    %143 = arith.mulf %21, %142 : vector<8x256xf32>
    %144 = arith.addf %140, %143 : vector<8x256xf32>
    %c1_141 = arith.constant 1 : index
    %c1_142 = arith.constant 1 : index
    %c4_143 = arith.constant 4 : index
    %c0_144 = arith.constant 0 : index
    %c0_145 = arith.constant 0 : index
    %145 = vector.load %arg3[%c1_141, %c1_142, %c4_143, %c0_144, %c0_145] : memref<2x4x9x8x256xf32, #tpu.memory_space<vmem>>, vector<1x1x1x8x256xf32>
    %146 = vector.shape_cast %145 : vector<1x1x1x8x256xf32> to vector<8x256xf32>
    %147 = arith.mulf %144, %146 : vector<8x256xf32>
    %c34_i32_146 = arith.constant 34 : i32
    %148 = tpu.dynamic_rotate %144 by %c34_i32_146 dim 1 : vector<8x256xf32>, i32 -> vector<8x256xf32>
    %c1_147 = arith.constant 1 : index
    %c1_148 = arith.constant 1 : index
    %c0_149 = arith.constant 0 : index
    %c0_150 = arith.constant 0 : index
    %c0_151 = arith.constant 0 : index
    %149 = vector.load %arg3[%c1_147, %c1_148, %c0_149, %c0_150, %c0_151] : memref<2x4x9x8x256xf32, #tpu.memory_space<vmem>>, vector<1x1x1x8x256xf32>
    %150 = vector.shape_cast %149 : vector<1x1x1x8x256xf32> to vector<8x256xf32>
    %151 = arith.mulf %148, %150 : vector<8x256xf32>
    %152 = arith.addf %147, %151 : vector<8x256xf32>
    %c32_i32_152 = arith.constant 32 : i32
    %153 = tpu.dynamic_rotate %144 by %c32_i32_152 dim 1 : vector<8x256xf32>, i32 -> vector<8x256xf32>
    %c1_153 = arith.constant 1 : index
    %c1_154 = arith.constant 1 : index
    %c1_155 = arith.constant 1 : index
    %c0_156 = arith.constant 0 : index
    %c0_157 = arith.constant 0 : index
    %154 = vector.load %arg3[%c1_153, %c1_154, %c1_155, %c0_156, %c0_157] : memref<2x4x9x8x256xf32, #tpu.memory_space<vmem>>, vector<1x1x1x8x256xf32>
    %155 = vector.shape_cast %154 : vector<1x1x1x8x256xf32> to vector<8x256xf32>
    %156 = arith.mulf %153, %155 : vector<8x256xf32>
    %157 = arith.addf %152, %156 : vector<8x256xf32>
    %c30_i32_158 = arith.constant 30 : i32
    %158 = tpu.dynamic_rotate %144 by %c30_i32_158 dim 1 : vector<8x256xf32>, i32 -> vector<8x256xf32>
    %c1_159 = arith.constant 1 : index
    %c1_160 = arith.constant 1 : index
    %c2_161 = arith.constant 2 : index
    %c0_162 = arith.constant 0 : index
    %c0_163 = arith.constant 0 : index
    %159 = vector.load %arg3[%c1_159, %c1_160, %c2_161, %c0_162, %c0_163] : memref<2x4x9x8x256xf32, #tpu.memory_space<vmem>>, vector<1x1x1x8x256xf32>
    %160 = vector.shape_cast %159 : vector<1x1x1x8x256xf32> to vector<8x256xf32>
    %161 = arith.mulf %158, %160 : vector<8x256xf32>
    %162 = arith.addf %157, %161 : vector<8x256xf32>
    %c2_i32_164 = arith.constant 2 : i32
    %163 = tpu.dynamic_rotate %144 by %c2_i32_164 dim 1 : vector<8x256xf32>, i32 -> vector<8x256xf32>
    %c1_165 = arith.constant 1 : index
    %c1_166 = arith.constant 1 : index
    %c3_167 = arith.constant 3 : index
    %c0_168 = arith.constant 0 : index
    %c0_169 = arith.constant 0 : index
    %164 = vector.load %arg3[%c1_165, %c1_166, %c3_167, %c0_168, %c0_169] : memref<2x4x9x8x256xf32, #tpu.memory_space<vmem>>, vector<1x1x1x8x256xf32>
    %165 = vector.shape_cast %164 : vector<1x1x1x8x256xf32> to vector<8x256xf32>
    %166 = arith.mulf %163, %165 : vector<8x256xf32>
    %167 = arith.addf %162, %166 : vector<8x256xf32>
    %c254_i32_170 = arith.constant 254 : i32
    %168 = tpu.dynamic_rotate %144 by %c254_i32_170 dim 1 : vector<8x256xf32>, i32 -> vector<8x256xf32>
    %c1_171 = arith.constant 1 : index
    %c1_172 = arith.constant 1 : index
    %c5_173 = arith.constant 5 : index
    %c0_174 = arith.constant 0 : index
    %c0_175 = arith.constant 0 : index
    %169 = vector.load %arg3[%c1_171, %c1_172, %c5_173, %c0_174, %c0_175] : memref<2x4x9x8x256xf32, #tpu.memory_space<vmem>>, vector<1x1x1x8x256xf32>
    %170 = vector.shape_cast %169 : vector<1x1x1x8x256xf32> to vector<8x256xf32>
    %171 = arith.mulf %168, %170 : vector<8x256xf32>
    %172 = arith.addf %167, %171 : vector<8x256xf32>
    %c226_i32_176 = arith.constant 226 : i32
    %173 = tpu.dynamic_rotate %144 by %c226_i32_176 dim 1 : vector<8x256xf32>, i32 -> vector<8x256xf32>
    %c1_177 = arith.constant 1 : index
    %c1_178 = arith.constant 1 : index
    %c6_179 = arith.constant 6 : index
    %c0_180 = arith.constant 0 : index
    %c0_181 = arith.constant 0 : index
    %174 = vector.load %arg3[%c1_177, %c1_178, %c6_179, %c0_180, %c0_181] : memref<2x4x9x8x256xf32, #tpu.memory_space<vmem>>, vector<1x1x1x8x256xf32>
    %175 = vector.shape_cast %174 : vector<1x1x1x8x256xf32> to vector<8x256xf32>
    %176 = arith.mulf %173, %175 : vector<8x256xf32>
    %177 = arith.addf %172, %176 : vector<8x256xf32>
    %c224_i32_182 = arith.constant 224 : i32
    %178 = tpu.dynamic_rotate %144 by %c224_i32_182 dim 1 : vector<8x256xf32>, i32 -> vector<8x256xf32>
    %c1_183 = arith.constant 1 : index
    %c1_184 = arith.constant 1 : index
    %c7_185 = arith.constant 7 : index
    %c0_186 = arith.constant 0 : index
    %c0_187 = arith.constant 0 : index
    %179 = vector.load %arg3[%c1_183, %c1_184, %c7_185, %c0_186, %c0_187] : memref<2x4x9x8x256xf32, #tpu.memory_space<vmem>>, vector<1x1x1x8x256xf32>
    %180 = vector.shape_cast %179 : vector<1x1x1x8x256xf32> to vector<8x256xf32>
    %181 = arith.mulf %178, %180 : vector<8x256xf32>
    %182 = arith.addf %177, %181 : vector<8x256xf32>
    %c222_i32_188 = arith.constant 222 : i32
    %183 = tpu.dynamic_rotate %144 by %c222_i32_188 dim 1 : vector<8x256xf32>, i32 -> vector<8x256xf32>
    %c1_189 = arith.constant 1 : index
    %c1_190 = arith.constant 1 : index
    %c8_191 = arith.constant 8 : index
    %c0_192 = arith.constant 0 : index
    %c0_193 = arith.constant 0 : index
    %184 = vector.load %arg3[%c1_189, %c1_190, %c8_191, %c0_192, %c0_193] : memref<2x4x9x8x256xf32, #tpu.memory_space<vmem>>, vector<1x1x1x8x256xf32>
    %185 = vector.shape_cast %184 : vector<1x1x1x8x256xf32> to vector<8x256xf32>
    %186 = arith.mulf %183, %185 : vector<8x256xf32>
    %187 = arith.addf %182, %186 : vector<8x256xf32>
    %c8_194 = arith.constant 8 : index
    %c2_195 = arith.constant 2 : index
    %188 = vector.load %arg5[%c8_194, %c2_195] : memref<32x8xf32, #tpu.memory_space<vmem>>, vector<8x1xf32>
    %189 = vector.broadcast %188 : vector<8x1xf32> to vector<8x256xf32>
    %190 = arith.addf %187, %189 : vector<8x256xf32>
    %cst_196 = arith.constant 0.000000e+00 : f32
    %191 = vector.broadcast %cst_196 : f32 to vector<8x256xf32>
    %192 = arith.cmpf ogt, %190, %191 : vector<8x256xf32>
    %c8_197 = arith.constant 8 : index
    %c3_198 = arith.constant 3 : index
    %193 = vector.load %arg5[%c8_197, %c3_198] : memref<32x8xf32, #tpu.memory_space<vmem>>, vector<8x1xf32>
    %194 = vector.broadcast %193 : vector<8x1xf32> to vector<8x256xf32>
    %195 = arith.mulf %190, %194 : vector<8x256xf32>
    %196 = arith.select %192, %190, %195 : vector<8x256xi1>, vector<8x256xf32>
    %197 = arith.truncf %196 : vector<8x256xf32> to vector<8x256xbf16>
    %c0_199 = arith.constant 0 : index
    %c2_200 = arith.constant 2 : index
    %c0_201 = arith.constant 0 : index
    %c0_202 = arith.constant 0 : index
    %c0_203 = arith.constant 0 : index
    %198 = vector.load %arg3[%c0_199, %c2_200, %c0_201, %c0_202, %c0_203] : memref<2x4x9x8x256xf32, #tpu.memory_space<vmem>>, vector<1x1x1x8x256xf32>
    %199 = vector.shape_cast %198 : vector<1x1x1x8x256xf32> to vector<8x256xf32>
    %200 = arith.mulf %14, %199 : vector<8x256xf32>
    %c0_204 = arith.constant 0 : index
    %c2_205 = arith.constant 2 : index
    %c1_206 = arith.constant 1 : index
    %c0_207 = arith.constant 0 : index
    %c0_208 = arith.constant 0 : index
    %201 = vector.load %arg3[%c0_204, %c2_205, %c1_206, %c0_207, %c0_208] : memref<2x4x9x8x256xf32, #tpu.memory_space<vmem>>, vector<1x1x1x8x256xf32>
    %202 = vector.shape_cast %201 : vector<1x1x1x8x256xf32> to vector<8x256xf32>
    %203 = arith.mulf %15, %202 : vector<8x256xf32>
    %204 = arith.addf %200, %203 : vector<8x256xf32>
    %c0_209 = arith.constant 0 : index
    %c2_210 = arith.constant 2 : index
    %c2_211 = arith.constant 2 : index
    %c0_212 = arith.constant 0 : index
    %c0_213 = arith.constant 0 : index
    %205 = vector.load %arg3[%c0_209, %c2_210, %c2_211, %c0_212, %c0_213] : memref<2x4x9x8x256xf32, #tpu.memory_space<vmem>>, vector<1x1x1x8x256xf32>
    %206 = vector.shape_cast %205 : vector<1x1x1x8x256xf32> to vector<8x256xf32>
    %207 = arith.mulf %16, %206 : vector<8x256xf32>
    %208 = arith.addf %204, %207 : vector<8x256xf32>
    %c0_214 = arith.constant 0 : index
    %c2_215 = arith.constant 2 : index
    %c3_216 = arith.constant 3 : index
    %c0_217 = arith.constant 0 : index
    %c0_218 = arith.constant 0 : index
    %209 = vector.load %arg3[%c0_214, %c2_215, %c3_216, %c0_217, %c0_218] : memref<2x4x9x8x256xf32, #tpu.memory_space<vmem>>, vector<1x1x1x8x256xf32>
    %210 = vector.shape_cast %209 : vector<1x1x1x8x256xf32> to vector<8x256xf32>
    %211 = arith.mulf %17, %210 : vector<8x256xf32>
    %212 = arith.addf %208, %211 : vector<8x256xf32>
    %c0_219 = arith.constant 0 : index
    %c2_220 = arith.constant 2 : index
    %c4_221 = arith.constant 4 : index
    %c0_222 = arith.constant 0 : index
    %c0_223 = arith.constant 0 : index
    %213 = vector.load %arg3[%c0_219, %c2_220, %c4_221, %c0_222, %c0_223] : memref<2x4x9x8x256xf32, #tpu.memory_space<vmem>>, vector<1x1x1x8x256xf32>
    %214 = vector.shape_cast %213 : vector<1x1x1x8x256xf32> to vector<8x256xf32>
    %215 = arith.mulf %13, %214 : vector<8x256xf32>
    %216 = arith.addf %212, %215 : vector<8x256xf32>
    %c0_224 = arith.constant 0 : index
    %c2_225 = arith.constant 2 : index
    %c5_226 = arith.constant 5 : index
    %c0_227 = arith.constant 0 : index
    %c0_228 = arith.constant 0 : index
    %217 = vector.load %arg3[%c0_224, %c2_225, %c5_226, %c0_227, %c0_228] : memref<2x4x9x8x256xf32, #tpu.memory_space<vmem>>, vector<1x1x1x8x256xf32>
    %218 = vector.shape_cast %217 : vector<1x1x1x8x256xf32> to vector<8x256xf32>
    %219 = arith.mulf %18, %218 : vector<8x256xf32>
    %220 = arith.addf %216, %219 : vector<8x256xf32>
    %c0_229 = arith.constant 0 : index
    %c2_230 = arith.constant 2 : index
    %c6_231 = arith.constant 6 : index
    %c0_232 = arith.constant 0 : index
    %c0_233 = arith.constant 0 : index
    %221 = vector.load %arg3[%c0_229, %c2_230, %c6_231, %c0_232, %c0_233] : memref<2x4x9x8x256xf32, #tpu.memory_space<vmem>>, vector<1x1x1x8x256xf32>
    %222 = vector.shape_cast %221 : vector<1x1x1x8x256xf32> to vector<8x256xf32>
    %223 = arith.mulf %19, %222 : vector<8x256xf32>
    %224 = arith.addf %220, %223 : vector<8x256xf32>
    %c0_234 = arith.constant 0 : index
    %c2_235 = arith.constant 2 : index
    %c7_236 = arith.constant 7 : index
    %c0_237 = arith.constant 0 : index
    %c0_238 = arith.constant 0 : index
    %225 = vector.load %arg3[%c0_234, %c2_235, %c7_236, %c0_237, %c0_238] : memref<2x4x9x8x256xf32, #tpu.memory_space<vmem>>, vector<1x1x1x8x256xf32>
    %226 = vector.shape_cast %225 : vector<1x1x1x8x256xf32> to vector<8x256xf32>
    %227 = arith.mulf %20, %226 : vector<8x256xf32>
    %228 = arith.addf %224, %227 : vector<8x256xf32>
    %c0_239 = arith.constant 0 : index
    %c2_240 = arith.constant 2 : index
    %c8_241 = arith.constant 8 : index
    %c0_242 = arith.constant 0 : index
    %c0_243 = arith.constant 0 : index
    %229 = vector.load %arg3[%c0_239, %c2_240, %c8_241, %c0_242, %c0_243] : memref<2x4x9x8x256xf32, #tpu.memory_space<vmem>>, vector<1x1x1x8x256xf32>
    %230 = vector.shape_cast %229 : vector<1x1x1x8x256xf32> to vector<8x256xf32>
    %231 = arith.mulf %21, %230 : vector<8x256xf32>
    %232 = arith.addf %228, %231 : vector<8x256xf32>
    %c1_244 = arith.constant 1 : index
    %c2_245 = arith.constant 2 : index
    %c4_246 = arith.constant 4 : index
    %c0_247 = arith.constant 0 : index
    %c0_248 = arith.constant 0 : index
    %233 = vector.load %arg3[%c1_244, %c2_245, %c4_246, %c0_247, %c0_248] : memref<2x4x9x8x256xf32, #tpu.memory_space<vmem>>, vector<1x1x1x8x256xf32>
    %234 = vector.shape_cast %233 : vector<1x1x1x8x256xf32> to vector<8x256xf32>
    %235 = arith.mulf %232, %234 : vector<8x256xf32>
    %c34_i32_249 = arith.constant 34 : i32
    %236 = tpu.dynamic_rotate %232 by %c34_i32_249 dim 1 : vector<8x256xf32>, i32 -> vector<8x256xf32>
    %c1_250 = arith.constant 1 : index
    %c2_251 = arith.constant 2 : index
    %c0_252 = arith.constant 0 : index
    %c0_253 = arith.constant 0 : index
    %c0_254 = arith.constant 0 : index
    %237 = vector.load %arg3[%c1_250, %c2_251, %c0_252, %c0_253, %c0_254] : memref<2x4x9x8x256xf32, #tpu.memory_space<vmem>>, vector<1x1x1x8x256xf32>
    %238 = vector.shape_cast %237 : vector<1x1x1x8x256xf32> to vector<8x256xf32>
    %239 = arith.mulf %236, %238 : vector<8x256xf32>
    %240 = arith.addf %235, %239 : vector<8x256xf32>
    %c32_i32_255 = arith.constant 32 : i32
    %241 = tpu.dynamic_rotate %232 by %c32_i32_255 dim 1 : vector<8x256xf32>, i32 -> vector<8x256xf32>
    %c1_256 = arith.constant 1 : index
    %c2_257 = arith.constant 2 : index
    %c1_258 = arith.constant 1 : index
    %c0_259 = arith.constant 0 : index
    %c0_260 = arith.constant 0 : index
    %242 = vector.load %arg3[%c1_256, %c2_257, %c1_258, %c0_259, %c0_260] : memref<2x4x9x8x256xf32, #tpu.memory_space<vmem>>, vector<1x1x1x8x256xf32>
    %243 = vector.shape_cast %242 : vector<1x1x1x8x256xf32> to vector<8x256xf32>
    %244 = arith.mulf %241, %243 : vector<8x256xf32>
    %245 = arith.addf %240, %244 : vector<8x256xf32>
    %c30_i32_261 = arith.constant 30 : i32
    %246 = tpu.dynamic_rotate %232 by %c30_i32_261 dim 1 : vector<8x256xf32>, i32 -> vector<8x256xf32>
    %c1_262 = arith.constant 1 : index
    %c2_263 = arith.constant 2 : index
    %c2_264 = arith.constant 2 : index
    %c0_265 = arith.constant 0 : index
    %c0_266 = arith.constant 0 : index
    %247 = vector.load %arg3[%c1_262, %c2_263, %c2_264, %c0_265, %c0_266] : memref<2x4x9x8x256xf32, #tpu.memory_space<vmem>>, vector<1x1x1x8x256xf32>
    %248 = vector.shape_cast %247 : vector<1x1x1x8x256xf32> to vector<8x256xf32>
    %249 = arith.mulf %246, %248 : vector<8x256xf32>
    %250 = arith.addf %245, %249 : vector<8x256xf32>
    %c2_i32_267 = arith.constant 2 : i32
    %251 = tpu.dynamic_rotate %232 by %c2_i32_267 dim 1 : vector<8x256xf32>, i32 -> vector<8x256xf32>
    %c1_268 = arith.constant 1 : index
    %c2_269 = arith.constant 2 : index
    %c3_270 = arith.constant 3 : index
    %c0_271 = arith.constant 0 : index
    %c0_272 = arith.constant 0 : index
    %252 = vector.load %arg3[%c1_268, %c2_269, %c3_270, %c0_271, %c0_272] : memref<2x4x9x8x256xf32, #tpu.memory_space<vmem>>, vector<1x1x1x8x256xf32>
    %253 = vector.shape_cast %252 : vector<1x1x1x8x256xf32> to vector<8x256xf32>
    %254 = arith.mulf %251, %253 : vector<8x256xf32>
    %255 = arith.addf %250, %254 : vector<8x256xf32>
    %c254_i32_273 = arith.constant 254 : i32
    %256 = tpu.dynamic_rotate %232 by %c254_i32_273 dim 1 : vector<8x256xf32>, i32 -> vector<8x256xf32>
    %c1_274 = arith.constant 1 : index
    %c2_275 = arith.constant 2 : index
    %c5_276 = arith.constant 5 : index
    %c0_277 = arith.constant 0 : index
    %c0_278 = arith.constant 0 : index
    %257 = vector.load %arg3[%c1_274, %c2_275, %c5_276, %c0_277, %c0_278] : memref<2x4x9x8x256xf32, #tpu.memory_space<vmem>>, vector<1x1x1x8x256xf32>
    %258 = vector.shape_cast %257 : vector<1x1x1x8x256xf32> to vector<8x256xf32>
    %259 = arith.mulf %256, %258 : vector<8x256xf32>
    %260 = arith.addf %255, %259 : vector<8x256xf32>
    %c226_i32_279 = arith.constant 226 : i32
    %261 = tpu.dynamic_rotate %232 by %c226_i32_279 dim 1 : vector<8x256xf32>, i32 -> vector<8x256xf32>
    %c1_280 = arith.constant 1 : index
    %c2_281 = arith.constant 2 : index
    %c6_282 = arith.constant 6 : index
    %c0_283 = arith.constant 0 : index
    %c0_284 = arith.constant 0 : index
    %262 = vector.load %arg3[%c1_280, %c2_281, %c6_282, %c0_283, %c0_284] : memref<2x4x9x8x256xf32, #tpu.memory_space<vmem>>, vector<1x1x1x8x256xf32>
    %263 = vector.shape_cast %262 : vector<1x1x1x8x256xf32> to vector<8x256xf32>
    %264 = arith.mulf %261, %263 : vector<8x256xf32>
    %265 = arith.addf %260, %264 : vector<8x256xf32>
    %c224_i32_285 = arith.constant 224 : i32
    %266 = tpu.dynamic_rotate %232 by %c224_i32_285 dim 1 : vector<8x256xf32>, i32 -> vector<8x256xf32>
    %c1_286 = arith.constant 1 : index
    %c2_287 = arith.constant 2 : index
    %c7_288 = arith.constant 7 : index
    %c0_289 = arith.constant 0 : index
    %c0_290 = arith.constant 0 : index
    %267 = vector.load %arg3[%c1_286, %c2_287, %c7_288, %c0_289, %c0_290] : memref<2x4x9x8x256xf32, #tpu.memory_space<vmem>>, vector<1x1x1x8x256xf32>
    %268 = vector.shape_cast %267 : vector<1x1x1x8x256xf32> to vector<8x256xf32>
    %269 = arith.mulf %266, %268 : vector<8x256xf32>
    %270 = arith.addf %265, %269 : vector<8x256xf32>
    %c222_i32_291 = arith.constant 222 : i32
    %271 = tpu.dynamic_rotate %232 by %c222_i32_291 dim 1 : vector<8x256xf32>, i32 -> vector<8x256xf32>
    %c1_292 = arith.constant 1 : index
    %c2_293 = arith.constant 2 : index
    %c8_294 = arith.constant 8 : index
    %c0_295 = arith.constant 0 : index
    %c0_296 = arith.constant 0 : index
    %272 = vector.load %arg3[%c1_292, %c2_293, %c8_294, %c0_295, %c0_296] : memref<2x4x9x8x256xf32, #tpu.memory_space<vmem>>, vector<1x1x1x8x256xf32>
    %273 = vector.shape_cast %272 : vector<1x1x1x8x256xf32> to vector<8x256xf32>
    %274 = arith.mulf %271, %273 : vector<8x256xf32>
    %275 = arith.addf %270, %274 : vector<8x256xf32>
    %c16 = arith.constant 16 : index
    %c2_297 = arith.constant 2 : index
    %276 = vector.load %arg5[%c16, %c2_297] : memref<32x8xf32, #tpu.memory_space<vmem>>, vector<8x1xf32>
    %277 = vector.broadcast %276 : vector<8x1xf32> to vector<8x256xf32>
    %278 = arith.addf %275, %277 : vector<8x256xf32>
    %cst_298 = arith.constant 0.000000e+00 : f32
    %279 = vector.broadcast %cst_298 : f32 to vector<8x256xf32>
    %280 = arith.cmpf ogt, %278, %279 : vector<8x256xf32>
    %c16_299 = arith.constant 16 : index
    %c3_300 = arith.constant 3 : index
    %281 = vector.load %arg5[%c16_299, %c3_300] : memref<32x8xf32, #tpu.memory_space<vmem>>, vector<8x1xf32>
    %282 = vector.broadcast %281 : vector<8x1xf32> to vector<8x256xf32>
    %283 = arith.mulf %278, %282 : vector<8x256xf32>
    %284 = arith.select %280, %278, %283 : vector<8x256xi1>, vector<8x256xf32>
    %285 = arith.truncf %284 : vector<8x256xf32> to vector<8x256xbf16>
    %c0_301 = arith.constant 0 : index
    %c3_302 = arith.constant 3 : index
    %c0_303 = arith.constant 0 : index
    %c0_304 = arith.constant 0 : index
    %c0_305 = arith.constant 0 : index
    %286 = vector.load %arg3[%c0_301, %c3_302, %c0_303, %c0_304, %c0_305] : memref<2x4x9x8x256xf32, #tpu.memory_space<vmem>>, vector<1x1x1x8x256xf32>
    %287 = vector.shape_cast %286 : vector<1x1x1x8x256xf32> to vector<8x256xf32>
    %288 = arith.mulf %14, %287 : vector<8x256xf32>
    %c0_306 = arith.constant 0 : index
    %c3_307 = arith.constant 3 : index
    %c1_308 = arith.constant 1 : index
    %c0_309 = arith.constant 0 : index
    %c0_310 = arith.constant 0 : index
    %289 = vector.load %arg3[%c0_306, %c3_307, %c1_308, %c0_309, %c0_310] : memref<2x4x9x8x256xf32, #tpu.memory_space<vmem>>, vector<1x1x1x8x256xf32>
    %290 = vector.shape_cast %289 : vector<1x1x1x8x256xf32> to vector<8x256xf32>
    %291 = arith.mulf %15, %290 : vector<8x256xf32>
    %292 = arith.addf %288, %291 : vector<8x256xf32>
    %c0_311 = arith.constant 0 : index
    %c3_312 = arith.constant 3 : index
    %c2_313 = arith.constant 2 : index
    %c0_314 = arith.constant 0 : index
    %c0_315 = arith.constant 0 : index
    %293 = vector.load %arg3[%c0_311, %c3_312, %c2_313, %c0_314, %c0_315] : memref<2x4x9x8x256xf32, #tpu.memory_space<vmem>>, vector<1x1x1x8x256xf32>
    %294 = vector.shape_cast %293 : vector<1x1x1x8x256xf32> to vector<8x256xf32>
    %295 = arith.mulf %16, %294 : vector<8x256xf32>
    %296 = arith.addf %292, %295 : vector<8x256xf32>
    %c0_316 = arith.constant 0 : index
    %c3_317 = arith.constant 3 : index
    %c3_318 = arith.constant 3 : index
    %c0_319 = arith.constant 0 : index
    %c0_320 = arith.constant 0 : index
    %297 = vector.load %arg3[%c0_316, %c3_317, %c3_318, %c0_319, %c0_320] : memref<2x4x9x8x256xf32, #tpu.memory_space<vmem>>, vector<1x1x1x8x256xf32>
    %298 = vector.shape_cast %297 : vector<1x1x1x8x256xf32> to vector<8x256xf32>
    %299 = arith.mulf %17, %298 : vector<8x256xf32>
    %300 = arith.addf %296, %299 : vector<8x256xf32>
    %c0_321 = arith.constant 0 : index
    %c3_322 = arith.constant 3 : index
    %c4_323 = arith.constant 4 : index
    %c0_324 = arith.constant 0 : index
    %c0_325 = arith.constant 0 : index
    %301 = vector.load %arg3[%c0_321, %c3_322, %c4_323, %c0_324, %c0_325] : memref<2x4x9x8x256xf32, #tpu.memory_space<vmem>>, vector<1x1x1x8x256xf32>
    %302 = vector.shape_cast %301 : vector<1x1x1x8x256xf32> to vector<8x256xf32>
    %303 = arith.mulf %13, %302 : vector<8x256xf32>
    %304 = arith.addf %300, %303 : vector<8x256xf32>
    %c0_326 = arith.constant 0 : index
    %c3_327 = arith.constant 3 : index
    %c5_328 = arith.constant 5 : index
    %c0_329 = arith.constant 0 : index
    %c0_330 = arith.constant 0 : index
    %305 = vector.load %arg3[%c0_326, %c3_327, %c5_328, %c0_329, %c0_330] : memref<2x4x9x8x256xf32, #tpu.memory_space<vmem>>, vector<1x1x1x8x256xf32>
    %306 = vector.shape_cast %305 : vector<1x1x1x8x256xf32> to vector<8x256xf32>
    %307 = arith.mulf %18, %306 : vector<8x256xf32>
    %308 = arith.addf %304, %307 : vector<8x256xf32>
    %c0_331 = arith.constant 0 : index
    %c3_332 = arith.constant 3 : index
    %c6_333 = arith.constant 6 : index
    %c0_334 = arith.constant 0 : index
    %c0_335 = arith.constant 0 : index
    %309 = vector.load %arg3[%c0_331, %c3_332, %c6_333, %c0_334, %c0_335] : memref<2x4x9x8x256xf32, #tpu.memory_space<vmem>>, vector<1x1x1x8x256xf32>
    %310 = vector.shape_cast %309 : vector<1x1x1x8x256xf32> to vector<8x256xf32>
    %311 = arith.mulf %19, %310 : vector<8x256xf32>
    %312 = arith.addf %308, %311 : vector<8x256xf32>
    %c0_336 = arith.constant 0 : index
    %c3_337 = arith.constant 3 : index
    %c7_338 = arith.constant 7 : index
    %c0_339 = arith.constant 0 : index
    %c0_340 = arith.constant 0 : index
    %313 = vector.load %arg3[%c0_336, %c3_337, %c7_338, %c0_339, %c0_340] : memref<2x4x9x8x256xf32, #tpu.memory_space<vmem>>, vector<1x1x1x8x256xf32>
    %314 = vector.shape_cast %313 : vector<1x1x1x8x256xf32> to vector<8x256xf32>
    %315 = arith.mulf %20, %314 : vector<8x256xf32>
    %316 = arith.addf %312, %315 : vector<8x256xf32>
    %c0_341 = arith.constant 0 : index
    %c3_342 = arith.constant 3 : index
    %c8_343 = arith.constant 8 : index
    %c0_344 = arith.constant 0 : index
    %c0_345 = arith.constant 0 : index
    %317 = vector.load %arg3[%c0_341, %c3_342, %c8_343, %c0_344, %c0_345] : memref<2x4x9x8x256xf32, #tpu.memory_space<vmem>>, vector<1x1x1x8x256xf32>
    %318 = vector.shape_cast %317 : vector<1x1x1x8x256xf32> to vector<8x256xf32>
    %319 = arith.mulf %21, %318 : vector<8x256xf32>
    %320 = arith.addf %316, %319 : vector<8x256xf32>
    %c1_346 = arith.constant 1 : index
    %c3_347 = arith.constant 3 : index
    %c4_348 = arith.constant 4 : index
    %c0_349 = arith.constant 0 : index
    %c0_350 = arith.constant 0 : index
    %321 = vector.load %arg3[%c1_346, %c3_347, %c4_348, %c0_349, %c0_350] : memref<2x4x9x8x256xf32, #tpu.memory_space<vmem>>, vector<1x1x1x8x256xf32>
    %322 = vector.shape_cast %321 : vector<1x1x1x8x256xf32> to vector<8x256xf32>
    %323 = arith.mulf %320, %322 : vector<8x256xf32>
    %c34_i32_351 = arith.constant 34 : i32
    %324 = tpu.dynamic_rotate %320 by %c34_i32_351 dim 1 : vector<8x256xf32>, i32 -> vector<8x256xf32>
    %c1_352 = arith.constant 1 : index
    %c3_353 = arith.constant 3 : index
    %c0_354 = arith.constant 0 : index
    %c0_355 = arith.constant 0 : index
    %c0_356 = arith.constant 0 : index
    %325 = vector.load %arg3[%c1_352, %c3_353, %c0_354, %c0_355, %c0_356] : memref<2x4x9x8x256xf32, #tpu.memory_space<vmem>>, vector<1x1x1x8x256xf32>
    %326 = vector.shape_cast %325 : vector<1x1x1x8x256xf32> to vector<8x256xf32>
    %327 = arith.mulf %324, %326 : vector<8x256xf32>
    %328 = arith.addf %323, %327 : vector<8x256xf32>
    %c32_i32_357 = arith.constant 32 : i32
    %329 = tpu.dynamic_rotate %320 by %c32_i32_357 dim 1 : vector<8x256xf32>, i32 -> vector<8x256xf32>
    %c1_358 = arith.constant 1 : index
    %c3_359 = arith.constant 3 : index
    %c1_360 = arith.constant 1 : index
    %c0_361 = arith.constant 0 : index
    %c0_362 = arith.constant 0 : index
    %330 = vector.load %arg3[%c1_358, %c3_359, %c1_360, %c0_361, %c0_362] : memref<2x4x9x8x256xf32, #tpu.memory_space<vmem>>, vector<1x1x1x8x256xf32>
    %331 = vector.shape_cast %330 : vector<1x1x1x8x256xf32> to vector<8x256xf32>
    %332 = arith.mulf %329, %331 : vector<8x256xf32>
    %333 = arith.addf %328, %332 : vector<8x256xf32>
    %c30_i32_363 = arith.constant 30 : i32
    %334 = tpu.dynamic_rotate %320 by %c30_i32_363 dim 1 : vector<8x256xf32>, i32 -> vector<8x256xf32>
    %c1_364 = arith.constant 1 : index
    %c3_365 = arith.constant 3 : index
    %c2_366 = arith.constant 2 : index
    %c0_367 = arith.constant 0 : index
    %c0_368 = arith.constant 0 : index
    %335 = vector.load %arg3[%c1_364, %c3_365, %c2_366, %c0_367, %c0_368] : memref<2x4x9x8x256xf32, #tpu.memory_space<vmem>>, vector<1x1x1x8x256xf32>
    %336 = vector.shape_cast %335 : vector<1x1x1x8x256xf32> to vector<8x256xf32>
    %337 = arith.mulf %334, %336 : vector<8x256xf32>
    %338 = arith.addf %333, %337 : vector<8x256xf32>
    %c2_i32_369 = arith.constant 2 : i32
    %339 = tpu.dynamic_rotate %320 by %c2_i32_369 dim 1 : vector<8x256xf32>, i32 -> vector<8x256xf32>
    %c1_370 = arith.constant 1 : index
    %c3_371 = arith.constant 3 : index
    %c3_372 = arith.constant 3 : index
    %c0_373 = arith.constant 0 : index
    %c0_374 = arith.constant 0 : index
    %340 = vector.load %arg3[%c1_370, %c3_371, %c3_372, %c0_373, %c0_374] : memref<2x4x9x8x256xf32, #tpu.memory_space<vmem>>, vector<1x1x1x8x256xf32>
    %341 = vector.shape_cast %340 : vector<1x1x1x8x256xf32> to vector<8x256xf32>
    %342 = arith.mulf %339, %341 : vector<8x256xf32>
    %343 = arith.addf %338, %342 : vector<8x256xf32>
    %c254_i32_375 = arith.constant 254 : i32
    %344 = tpu.dynamic_rotate %320 by %c254_i32_375 dim 1 : vector<8x256xf32>, i32 -> vector<8x256xf32>
    %c1_376 = arith.constant 1 : index
    %c3_377 = arith.constant 3 : index
    %c5_378 = arith.constant 5 : index
    %c0_379 = arith.constant 0 : index
    %c0_380 = arith.constant 0 : index
    %345 = vector.load %arg3[%c1_376, %c3_377, %c5_378, %c0_379, %c0_380] : memref<2x4x9x8x256xf32, #tpu.memory_space<vmem>>, vector<1x1x1x8x256xf32>
    %346 = vector.shape_cast %345 : vector<1x1x1x8x256xf32> to vector<8x256xf32>
    %347 = arith.mulf %344, %346 : vector<8x256xf32>
    %348 = arith.addf %343, %347 : vector<8x256xf32>
    %c226_i32_381 = arith.constant 226 : i32
    %349 = tpu.dynamic_rotate %320 by %c226_i32_381 dim 1 : vector<8x256xf32>, i32 -> vector<8x256xf32>
    %c1_382 = arith.constant 1 : index
    %c3_383 = arith.constant 3 : index
    %c6_384 = arith.constant 6 : index
    %c0_385 = arith.constant 0 : index
    %c0_386 = arith.constant 0 : index
    %350 = vector.load %arg3[%c1_382, %c3_383, %c6_384, %c0_385, %c0_386] : memref<2x4x9x8x256xf32, #tpu.memory_space<vmem>>, vector<1x1x1x8x256xf32>
    %351 = vector.shape_cast %350 : vector<1x1x1x8x256xf32> to vector<8x256xf32>
    %352 = arith.mulf %349, %351 : vector<8x256xf32>
    %353 = arith.addf %348, %352 : vector<8x256xf32>
    %c224_i32_387 = arith.constant 224 : i32
    %354 = tpu.dynamic_rotate %320 by %c224_i32_387 dim 1 : vector<8x256xf32>, i32 -> vector<8x256xf32>
    %c1_388 = arith.constant 1 : index
    %c3_389 = arith.constant 3 : index
    %c7_390 = arith.constant 7 : index
    %c0_391 = arith.constant 0 : index
    %c0_392 = arith.constant 0 : index
    %355 = vector.load %arg3[%c1_388, %c3_389, %c7_390, %c0_391, %c0_392] : memref<2x4x9x8x256xf32, #tpu.memory_space<vmem>>, vector<1x1x1x8x256xf32>
    %356 = vector.shape_cast %355 : vector<1x1x1x8x256xf32> to vector<8x256xf32>
    %357 = arith.mulf %354, %356 : vector<8x256xf32>
    %358 = arith.addf %353, %357 : vector<8x256xf32>
    %c222_i32_393 = arith.constant 222 : i32
    %359 = tpu.dynamic_rotate %320 by %c222_i32_393 dim 1 : vector<8x256xf32>, i32 -> vector<8x256xf32>
    %c1_394 = arith.constant 1 : index
    %c3_395 = arith.constant 3 : index
    %c8_396 = arith.constant 8 : index
    %c0_397 = arith.constant 0 : index
    %c0_398 = arith.constant 0 : index
    %360 = vector.load %arg3[%c1_394, %c3_395, %c8_396, %c0_397, %c0_398] : memref<2x4x9x8x256xf32, #tpu.memory_space<vmem>>, vector<1x1x1x8x256xf32>
    %361 = vector.shape_cast %360 : vector<1x1x1x8x256xf32> to vector<8x256xf32>
    %362 = arith.mulf %359, %361 : vector<8x256xf32>
    %363 = arith.addf %358, %362 : vector<8x256xf32>
    %c24 = arith.constant 24 : index
    %c2_399 = arith.constant 2 : index
    %364 = vector.load %arg5[%c24, %c2_399] : memref<32x8xf32, #tpu.memory_space<vmem>>, vector<8x1xf32>
    %365 = vector.broadcast %364 : vector<8x1xf32> to vector<8x256xf32>
    %366 = arith.addf %363, %365 : vector<8x256xf32>
    %cst_400 = arith.constant 0.000000e+00 : f32
    %367 = vector.broadcast %cst_400 : f32 to vector<8x256xf32>
    %368 = arith.cmpf ogt, %366, %367 : vector<8x256xf32>
    %c24_401 = arith.constant 24 : index
    %c3_402 = arith.constant 3 : index
    %369 = vector.load %arg5[%c24_401, %c3_402] : memref<32x8xf32, #tpu.memory_space<vmem>>, vector<8x1xf32>
    %370 = vector.broadcast %369 : vector<8x1xf32> to vector<8x256xf32>
    %371 = arith.mulf %366, %370 : vector<8x256xf32>
    %372 = arith.select %368, %366, %371 : vector<8x256xi1>, vector<8x256xf32>
    %373 = arith.truncf %372 : vector<8x256xf32> to vector<8x256xbf16>
    %374 = tpu.concatenate %109, %197, %285, %373 in 0 : vector<8x256xbf16>, vector<8x256xbf16>, vector<8x256xbf16>, vector<8x256xbf16> -> vector<32x256xbf16>
    %c0_403 = arith.constant 0 : index
    %c0_404 = arith.constant 0 : index
    %375 = vector.load %arg4[%c0_403, %c0_404] : memref<32x32xbf16, #tpu.memory_space<vmem>>, vector<32x32xbf16>
    %cst_405 = arith.constant dense<0.000000e+00> : vector<32x256xf32>
    %376 = tpu.matmul %375, %374, %cst_405 {dimension_numbers = #tpu.dot_dimension_numbers<[1], [0], [0], [1], [0, 0, 1, 1], [], []>} : vector<32x32xbf16>, vector<32x256xbf16>, vector<32x256xf32> -> vector<32x256xf32>
    %c0_406 = arith.constant 0 : index
    %c4_407 = arith.constant 4 : index
    %377 = vector.load %arg5[%c0_406, %c4_407] : memref<32x8xf32, #tpu.memory_space<vmem>>, vector<32x1xf32>
    %378 = vector.broadcast %377 : vector<32x1xf32> to vector<32x256xf32>
    %379 = arith.mulf %376, %378 : vector<32x256xf32>
    %c0_408 = arith.constant 0 : index
    %c5_409 = arith.constant 5 : index
    %380 = vector.load %arg5[%c0_408, %c5_409] : memref<32x8xf32, #tpu.memory_space<vmem>>, vector<32x1xf32>
    %381 = vector.broadcast %380 : vector<32x1xf32> to vector<32x256xf32>
    %382 = arith.addf %379, %381 : vector<32x256xf32>
    %c0_410 = arith.constant 0 : index
    %c0_411 = arith.constant 0 : index
    %c0_412 = arith.constant 0 : index
    %383 = vector.load %arg1[%c0_410, %c0_411, %c0_412] : memref<1x32x256xf32, #tpu.memory_space<vmem>>, vector<1x32x256xf32>
    %384 = vector.shape_cast %383 : vector<1x32x256xf32> to vector<32x256xf32>
    %385 = arith.addf %382, %384 : vector<32x256xf32>
    %cst_413 = arith.constant 0.000000e+00 : f32
    %386 = vector.broadcast %cst_413 : f32 to vector<32x256xf32>
    %387 = arith.cmpf ogt, %385, %386 : vector<32x256xf32>
    %c0_414 = arith.constant 0 : index
    %c6_415 = arith.constant 6 : index
    %388 = vector.load %arg5[%c0_414, %c6_415] : memref<32x8xf32, #tpu.memory_space<vmem>>, vector<32x1xf32>
    %389 = vector.broadcast %388 : vector<32x1xf32> to vector<32x256xf32>
    %390 = arith.mulf %385, %389 : vector<32x256xf32>
    %391 = arith.select %387, %385, %390 : vector<32x256xi1>, vector<32x256xf32>
    %c0_416 = arith.constant 0 : index
    %c0_417 = arith.constant 0 : index
    %c0_418 = arith.constant 0 : index
    %392 = vector.load %arg6[%c0_416, %c0_417, %c0_418] : memref<1x32x256xf32, #tpu.memory_space<vmem>>, vector<1x32x256xf32>
    %393 = vector.shape_cast %392 : vector<1x32x256xf32> to vector<32x256xf32>
    %394 = vector.shape_cast %391 : vector<32x256xf32> to vector<1x32x256xf32>
    tpu.vector_store %arg6[%c0_416, %c0_417, %c0_418], %394 {strides = array<i32>} : memref<1x32x256xf32, #tpu.memory_space<vmem>>, vector<1x32x256xf32>,
    return
  }
  func.func @transform_0(%arg0: i32) -> (i32, i32, i32) {
    %c0_i32 = arith.constant 0 : i32
    %c0_i32_0 = arith.constant 0 : i32
    %c0_i32_1 = arith.constant 0 : i32
    return %arg0, %c0_i32, %c0_i32_0 : i32, i32, i32
  }
  func.func @transform_1(%arg0: i32) -> (i32, i32) {
    %c0_i32 = arith.constant 0 : i32
    %c0_i32_0 = arith.constant 0 : i32
    %c0_i32_1 = arith.constant 0 : i32
    return %c0_i32, %c0_i32_0 : i32, i32
  }
  func.func @transform_2(%arg0: i32) -> (i32, i32, i32, i32, i32) {
    %c0_i32 = arith.constant 0 : i32
    %c0_i32_0 = arith.constant 0 : i32
    %c0_i32_1 = arith.constant 0 : i32
    %c0_i32_2 = arith.constant 0 : i32
    %c0_i32_3 = arith.constant 0 : i32
    %c0_i32_4 = arith.constant 0 : i32
    return %c0_i32, %c0_i32_0, %c0_i32_1, %c0_i32_2, %c0_i32_3 : i32, i32, i32, i32, i32
  }
  func.func @transform_3(%arg0: i32) -> (i32, i32) {
    %c0_i32 = arith.constant 0 : i32
    %c0_i32_0 = arith.constant 0 : i32
    %c0_i32_1 = arith.constant 0 : i32
    return %c0_i32, %c0_i32_0 : i32, i32
  }
  func.func @transform_4(%arg0: i32) -> (i32, i32) {
    %c0_i32 = arith.constant 0 : i32
    %c0_i32_0 = arith.constant 0 : i32
    %c0_i32_1 = arith.constant 0 : i32
    return %c0_i32, %c0_i32_0 : i32, i32
  }
  func.func @transform_5(%arg0: i32) -> (i32, i32, i32) {
    %c0_i32 = arith.constant 0 : i32
    %c0_i32_0 = arith.constant 0 : i32
    %c0_i32_1 = arith.constant 0 : i32
    return %arg0, %c0_i32, %c0_i32_0 : i32, i32, i32
  }
}

</mosaic_0001>

<llo_original>
// kernel: sesp_forward.1
$region0: #{sesp_forward.1}
  #allocation0 [shape = 'u32[]', space=smem, size = 0x4, offset = 0x4, fixed_abs, tag = 'smem constant byte address 0x4 - core index']
  #allocation1 [shape = 'u32[144,128]{1,0:T(1,128)}', space=vmem, size = 0x12000, scoped, tag = 'internal scratch']
  %s0 = inlined_call_operand.vmem [shape: f32[2,32,256], index: 0, kind: input, shape index: {}]
  %s1 = inlined_call_operand.vmem [shape: bf16[8,32], index: 1, kind: input, shape index: {}]
  %s2 = inlined_call_operand.hbm [shape: f32[2,4,9,8,256], index: 2, kind: input, shape index: {}]
  %s3 = inlined_call_operand.vmem [shape: bf16[32,32], index: 3, kind: input, shape index: {}]
  %s4 = inlined_call_operand.vmem [shape: f32[32,8], index: 4, kind: input, shape index: {}]
  %s5 = inlined_call_operand.vmem [shape: f32[2,32,256], index: 5, kind: output, shape index: {}]
  %s6 = sld [smem:[#allocation0]]
  $region57: #{sesp_forward.1} parent=0
    _
  %s8 = ssub.s32 1, %s6
  %s9 = scalar_select 0, %s8, %s6
  $region1: #{sesp_forward.1} parent=0
    #allocation2 [shape = 'u8[589824]{0}', space=vmem, size = 0x90000, scoped, tag = 'input window, operand 2, single buffered']
    #allocation3 [shape = 's32[2]{0}', space=sflag, size = 0x8, scoped, tag = 'scoped memory for sesp_forward.1']
    %10 = vsyncpa [#allocation3], 0
    loop: start=0, step=1, limit=4
    $region2: #{sesp_forward.1} parent=1 // loop_pre_header
      _
    $region3: #{sesp_forward.1} parent=1 // loop_header
      %s12 = sphi 0, %s16
      %p13 = scmp.ge.s32.totalorder %s12, 4
      %s22 = sphi 0, %s24
      %s25 = sphi 0, %s22
      %s26 = sphi 0, %s25
      %s42 = sphi 0, %s26
      %s46 = sphi 0, %s46
      %s48 = sphi 0, %s46
      %s49 = sphi 0, %s48
      %s63 = sphi 0, %s49
      %s67 = sphi 0, %s67
      %s69 = sphi 0, %s67
      %s70 = sphi 0, %s69
      %s84 = sphi 0, %s70
      %s88 = sphi 0, %s88
      %s90 = sphi 0, %s88
      %s91 = sphi 0, %s90
      %s105 = sphi 0, %s91
      %s109 = sphi 0, %s109
      %s111 = sphi 0, %s109
      %s112 = sphi 0, %s111
      %s126 = sphi 0, %s112
      %s132 = sphi 0, %s134
      %s135 = sphi 0, %s132
      %s136 = sphi 0, %s135
      %s152 = sphi 0, %s136
    $region4: #{sesp_forward.1} parent=1 // loop_header_branch
      %15 = sbr.rel (%p13) target = $region8
    $region5: #{sesp_forward.1} parent=1 // loop_body
      %s17 = ssub.s32 %s12, 1
      %s18 = ssub.s32 %s12, 2
      %s19 = sadd.s32 %s12, 1
      %s20 = ssub.s32 %s12, %s19
      %p21 = scmp.eq.s32.totalorder %s20, 0
      %s23 = sadd.s32 %s22, 1
      %s24 = scalar_select %p21, %s22, %s23
      %p27 = pneg %p21
      %p28 = scmp.eq.s32.totalorder %s12, 1
      %p29 = por %p27, %p28
      %p30 = scmp.ne.s32.totalorder %s22, %s25
      %p31 = scmp.eq.s32.totalorder %s12, 0
      %p32 = por %p30, %p31
      %p33 = scmp.ne.s32.totalorder %s22, %s25
      %p34 = scmp.eq.s32.totalorder %s17, 1
      %p35 = por %p33, %p34
      %p36 = scmp.ne.s32.totalorder %s25, %s26
      %p37 = scmp.eq.s32.totalorder %s17, 0
      %p38 = por %p36, %p37
      %p39 = scmp.ne.s32.totalorder %s25, %s26
      %p40 = scmp.eq.s32.totalorder %s18, 1
      %p41 = por %p39, %p40
      %p43 = scmp.ne.s32.totalorder %s26, %s42
      %p44 = scmp.eq.s32.totalorder %s18, 0
      %p45 = por %p43, %p44
      %s47 = sadd.s32 %s46, 1
      %p50 = scmp.eq.s32.totalorder %s12, 1
      %p51 = scmp.ne.s32.totalorder %s46, %s48
      %p52 = scmp.eq.s32.totalorder %s12, 0
      %p53 = por %p51, %p52
      %p54 = scmp.ne.s32.totalorder %s46, %s48
      %p55 = scmp.eq.s32.totalorder %s17, 1
      %p56 = por %p54, %p55
      %p57 = scmp.ne.s32.totalorder %s48, %s49
      %p58 = scmp.eq.s32.totalorder %s17, 0
      %p59 = por %p57, %p58
      %p60 = scmp.ne.s32.totalorder %s48, %s49
      %p61 = scmp.eq.s32.totalorder %s18, 1
      %p62 = por %p60, %p61
      %p64 = scmp.ne.s32.totalorder %s49, %s63
      %p65 = scmp.eq.s32.totalorder %s18, 0
      %p66 = por %p64, %p65
      %s68 = sadd.s32 %s67, 1
      %p71 = scmp.eq.s32.totalorder %s12, 1
      %p72 = scmp.ne.s32.totalorder %s67, %s69
      %p73 = scmp.eq.s32.totalorder %s12, 0
      %p74 = por %p72, %p73
      %p75 = scmp.ne.s32.totalorder %s67, %s69
      %p76 = scmp.eq.s32.totalorder %s17, 1
      %p77 = por %p75, %p76
      %p78 = scmp.ne.s32.totalorder %s69, %s70
      %p79 = scmp.eq.s32.totalorder %s17, 0
      %p80 = por %p78, %p79
      %p81 = scmp.ne.s32.totalorder %s69, %s70
      %p82 = scmp.eq.s32.totalorder %s18, 1
      %p83 = por %p81, %p82
      %p85 = scmp.ne.s32.totalorder %s70, %s84
      %p86 = scmp.eq.s32.totalorder %s18, 0
      %p87 = por %p85, %p86
      %s89 = sadd.s32 %s88, 1
      %p92 = scmp.eq.s32.totalorder %s12, 1
      %p93 = scmp.ne.s32.totalorder %s88, %s90
      %p94 = scmp.eq.s32.totalorder %s12, 0
      %p95 = por %p93, %p94
      %p96 = scmp.ne.s32.totalorder %s88, %s90
      %p97 = scmp.eq.s32.totalorder %s17, 1
      %p98 = por %p96, %p97
      %p99 = scmp.ne.s32.totalorder %s90, %s91
      %p100 = scmp.eq.s32.totalorder %s17, 0
      %p101 = por %p99, %p100
      %p102 = scmp.ne.s32.totalorder %s90, %s91
      %p103 = scmp.eq.s32.totalorder %s18, 1
      %p104 = por %p102, %p103
      %p106 = scmp.ne.s32.totalorder %s91, %s105
      %p107 = scmp.eq.s32.totalorder %s18, 0
      %p108 = por %p106, %p107
      %s110 = sadd.s32 %s109, 1
      %p113 = scmp.eq.s32.totalorder %s12, 1
      %p114 = scmp.ne.s32.totalorder %s109, %s111
      %p115 = scmp.eq.s32.totalorder %s12, 0
      %p116 = por %p114, %p115
      %p117 = scmp.ne.s32.totalorder %s109, %s111
      %p118 = scmp.eq.s32.totalorder %s17, 1
      %p119 = por %p117, %p118
      %p120 = scmp.ne.s32.totalorder %s111, %s112
      %p121 = scmp.eq.s32.totalorder %s17, 0
      %p122 = por %p120, %p121
      %p123 = scmp.ne.s32.totalorder %s111, %s112
      %p124 = scmp.eq.s32.totalorder %s18, 1
      %p125 = por %p123, %p124
      %p127 = scmp.ne.s32.totalorder %s112, %s126
      %p128 = scmp.eq.s32.totalorder %s18, 0
      %p129 = por %p127, %p128
      %s130 = ssub.s32 %s12, %s19
      %p131 = scmp.eq.s32.totalorder %s130, 0
      %s133 = sadd.s32 %s132, 1
      %s134 = scalar_select %p131, %s132, %s133
      %p137 = pneg %p131
      %p138 = scmp.eq.s32.totalorder %s12, 1
      %p139 = por %p137, %p138
      %p140 = scmp.ne.s32.totalorder %s132, %s135
      %p141 = scmp.eq.s32.totalorder %s12, 0
      %p142 = por %p140, %p141
      %p143 = scmp.ne.s32.totalorder %s132, %s135
      %p144 = scmp.eq.s32.totalorder %s17, 1
      %p145 = por %p143, %p144
      %p146 = scmp.ne.s32.totalorder %s135, %s136
      %p147 = scmp.eq.s32.totalorder %s17, 0
      %p148 = por %p146, %p147
      %p149 = scmp.ne.s32.totalorder %s135, %s136
      %p150 = scmp.eq.s32.totalorder %s18, 1
      %p151 = por %p149, %p150
      %p153 = scmp.ne.s32.totalorder %s136, %s152
      %p154 = scmp.eq.s32.totalorder %s18, 0
      %p155 = por %p153, %p154
      %p156 = scmp.le.s32.totalorder 1, %s12
      %p157 = scmp.lt.s32.totalorder %s12, 3
      %p158 = pnand %p156, %p157
      %p159 = pneg %p158
      // Predicated region
      $region9: #{sesp_forward.1} parent=5 // pred_check
        _
      $region10: #{sesp_forward.1} parent=5 // pred_check_branch
        %161 = sbr.rel (%p158) target = $region12
      $region11: #{sesp_forward.1} parent=5 // pred_region
        %s162 = ssub.s32 %s12, 1
        // Predicated region
        $region13: #{sesp_forward.1} parent=11 // pred_check
          %p163 = pneg %p59
        $region14: #{sesp_forward.1} parent=11 // pred_check_branch
          %165 = sbr.rel (%p163) target = $region16
        $region15: #{sesp_forward.1} parent=11 // pred_region
          _
        $region16: #{sesp_forward.1} parent=11 // pred_fallthru
          _
        // Predicated region
        $region17: #{sesp_forward.1} parent=11 // pred_check
          %p166 = pneg %p80
        $region18: #{sesp_forward.1} parent=11 // pred_check_branch
          %168 = sbr.rel (%p166) target = $region20
        $region19: #{sesp_forward.1} parent=11 // pred_region
          %s170 = ssub.s32 18432, 18432
          %171 = vsyncadd [#allocation3], %s170
          %s172 = sshll.u32 [#allocation2], 4
          %s173 = int_to_ptr.vmem [resolvable:$true] %s172
          %178 = dma.hbm_to_vmem [thread:$0]  %s2, 18432, %s173, [#allocation3], 256, 256, 16
        $region20: #{sesp_forward.1} parent=11 // pred_fallthru
          _
        // Predicated region
        $region21: #{sesp_forward.1} parent=11 // pred_check
          %p179 = pneg %p101
        $region22: #{sesp_forward.1} parent=11 // pred_check_branch
          %181 = sbr.rel (%p179) target = $region24
        $region23: #{sesp_forward.1} parent=11 // pred_region
          _
        $region24: #{sesp_forward.1} parent=11 // pred_fallthru
          _
        // Predicated region
        $region25: #{sesp_forward.1} parent=11 // pred_check
          %p182 = pneg %p122
        $region26: #{sesp_forward.1} parent=11 // pred_check_branch
          %184 = sbr.rel (%p182) target = $region28
        $region27: #{sesp_forward.1} parent=11 // pred_region
          _
        $region28: #{sesp_forward.1} parent=11 // pred_fallthru
          _
      $region12: #{sesp_forward.1} parent=5 // pred_fallthru
        _
      %p185 = scmp.lt.s32.totalorder %s12, 2
      // Predicated region
      $region29: #{sesp_forward.1} parent=5 // pred_check
        %p186 = pneg %p185
      $region30: #{sesp_forward.1} parent=5 // pred_check_branch
        %188 = sbr.rel (%p186) target = $region32
      $region31: #{sesp_forward.1} parent=5 // pred_region
        // Predicated region
        $region33: #{sesp_forward.1} parent=31 // pred_check
          %p189 = pneg %p32
        $region34: #{sesp_forward.1} parent=31 // pred_check_branch
          %191 = sbr.rel (%p189) target = $region36
        $region35: #{sesp_forward.1} parent=31 // pred_region
          %p192 = scmp.lt.s32.totalorder %s12, 1
          %s193 = scalar_select %p192, %s12, 1
          %s194 = smul.addr %s193, 8
          %s195 = smul.addr %s194, 8
          %s196 = scalar_lea.vmem %s0, %s195
        $region36: #{sesp_forward.1} parent=31 // pred_fallthru
          _
      $region32: #{sesp_forward.1} parent=5 // pred_fallthru
        _
      %p197 = scmp.le.s32.totalorder 1, %s12
      %p198 = scmp.lt.s32.totalorder %s12, 3
      %p199 = pnand %p197, %p198
      %p200 = pneg %p199
      // Predicated region
      $region37: #{sesp_forward.1} parent=5 // pred_check
        _
      $region38: #{sesp_forward.1} parent=5 // pred_check_branch
        %202 = sbr.rel (%p199) target = $region40
      $region39: #{sesp_forward.1} parent=5 // pred_region
        %s203 = ssub.s32 %s12, 1
        // Predicated region
        $region41: #{sesp_forward.1} parent=39 // pred_check
          %p204 = pneg %p80
        $region42: #{sesp_forward.1} parent=39 // pred_check_branch
          %206 = sbr.rel (%p204) target = $region44
        $region43: #{sesp_forward.1} parent=39 // pred_region
          %207 = dma.done [#allocation3], 18432
        $region44: #{sesp_forward.1} parent=39 // pred_fallthru
          _
        %p208 = scmp.lt.s32.totalorder %s17, 1
        %s209 = scalar_select %p208, %s17, 1
        %s210 = smul.addr %s209, 8
        %s211 = smul.addr %s210, 8
        %s212 = scalar_lea.vmem %s0, %s211
        %p213 = pneg %p38
        %p214 = pneg %p35
        %p215 = pneg %p59
        %p216 = pneg %p56
        %p217 = pneg %p80
        %p218 = pneg %p77
        %p219 = pneg %p101
        %p220 = pneg %p98
        %p221 = pneg %p122
        %p222 = pneg %p119
        %p223 = pneg %p148
        %p224 = pneg %p145
        %p225 = scmp.lt.s32.totalorder %s17, 1
        %s226 = scalar_select %p225, %s17, 1
        %s227 = smul.addr %s226, 8
        %s228 = smul.addr %s227, 8
        %s229 = scalar_lea.vmem %s5, %s228
        %p230 = scmp.lt.s32.totalorder %s17, 1
        %s231 = scalar_select %p230, %s17, 1
        %s232 = smul.addr %s231, 8
        %s233 = smul.addr %s232, 8
        %s234 = scalar_lea.vmem %s0, %s233
        %p235 = scmp.lt.s32.totalorder %s17, 1
        %s236 = scalar_select %p235, %s17, 1
        %s237 = smul.addr %s236, 8
        %s238 = smul.addr %s237, 8
        %s239 = scalar_lea.vmem %s5, %s238
        %v241 = vld [vmem:[%s1] sm:$0xf]
        %v242 = vld [vmem:[%s234] sm:$0xff]
        %v243 = vld [vmem:[%s234 + $0x8] sm:$0xff]
        %v244 = vld [vmem:[%s234 + $0x10] sm:$0xff]
        %v245 = vld [vmem:[%s234 + $0x18] sm:$0xff]
        %v246 = vld [vmem:[%s234 + $0x20] sm:$0xff]
        %v247 = vld [vmem:[%s234 + $0x28] sm:$0xff]
        %v248 = vld [vmem:[%s234 + $0x30] sm:$0xff]
        %v249 = vld [vmem:[%s234 + $0x38] sm:$0xff]
        %v250 = vpack.c.bf16 %v244, %v242
        %v251 = vpack.c.bf16 %v245, %v243
        %v252 = vpack.c.bf16 %v248, %v246
        %v253 = vpack.c.bf16 %v249, %v247
        %v254 = vld [vmem:[%s4] sm:$0xff]
        %256 = vset.pattern.permute.xlu0 0
        %257 = vperm.xlu0 %256, %v254
        %v258 = vpop.permute.xlu0 %257
        %vm260 = vcmask 261120
        %v262 = vsel %vm260, %v241, 0
        %264 = vmatprep.subr.bf16.mxu0 0
        %265 = vmatpush1.bf16.msra.mxu0 0
        %266 = vmatprep.subr.bf16.mxu0 0
        %267 = vmatpush1.bf16.msra.mxu0 0
        %268 = vmatprep.subr.bf16.mxu0 0
        %269 = vmatpush1.bf16.msra.mxu0 0
        %270 = vmatprep.subr.bf16.mxu0 0
        %271 = vmatpush1.bf16.msra.mxu0 0
        %272 = vmatprep.subr.bf16.mxu0 0
        %273 = vmatpush1.bf16.msra.mxu0 0
        %274 = vmatprep.subr.bf16.mxu0 0
        %275 = vmatpush1.bf16.msra.mxu0 0
        %276 = vmatprep.subr.bf16.mxu0 %v253
        %277 = vmatpush1.bf16.msra.mxu0 %v252
        %278 = vmatprep.subr.bf16.mxu0 %v251
        %279 = vmatpush1.bf16.msra.mxu0 %v250
        %280 = vmatprep.subr.bf16.mxu0 0
        %281 = vmatpush2.bf16.msra.mxu0 0
        %282 = vmatprep.subr.bf16.mxu0 0
        %283 = vmatpush2.bf16.msra.mxu0 0
        %284 = vmatprep.subr.bf16.mxu0 0
        %285 = vmatpush2.bf16.msra.mxu0 0
        %286 = vmatprep.subr.bf16.mxu0 0
        %287 = vmatpush2.bf16.msra.mxu0 0
        %288 = vmatprep.subr.bf16.mxu0 0
        %289 = vmatpush2.bf16.msra.mxu0 0
        %290 = vmatprep.subr.bf16.mxu0 0
        %291 = vmatpush2.bf16.msra.mxu0 0
        %292 = vmatprep.subr.bf16.mxu0 0
        %293 = vmatpush2.bf16.msra.mxu0 0
        %294 = vmatprep.subr.bf16.mxu0 0
        %295 = vmatpush2.bf16.msra.mxu0 0
        %296 = vmatprep.mubr.bf16.mxu0 0
        %297 = vmatmul.mubr.bf16.gmra.mxu0 %v262
        %v298 = vpop.f32.mrf.mxu0
        %v299 = vadd.f32 %v258, %v298
        %v300 = vpop.f32.mrf.mxu0
        %v301 = vadd.f32 %v258, %v300
        %v302 = vpop.f32.mrf.mxu0
        %v303 = vpop.f32.mrf.mxu0
        %304 = vdwg.mxu0
        %vm305 = vcmp.gt.f32.partialorder %v299, 0.0
        %vm306 = vcmp.gt.f32.partialorder %v301, 0.0
        %307 = vset.pattern.permute.xlu0 1
        %308 = vperm.xlu0 %307, %v254
        %v309 = vpop.permute.xlu0 %308
        %v311 = vmul.f32 %v299, %v309
        %v312 = vmul.f32 %v301, %v309
        %v313 = vsel %vm305, %v299, %v311
        %v314 = vsel %vm306, %v301, %v312
        %315 = vrot.lane.b32.xlu0 %v313, 17
        %v316 = vpop.permute.xlu0 %315
        %317 = vrot.lane.b32.xlu0 %v314, 17
        %v318 = vpop.permute.xlu0 %317
        %v319 = vlaneseq
        %v320 = vand.u32 %v319, 127
        %vm321 = vcmp.lt.s32.totalorder %v320, 17
        %v322 = vsel %vm321, %v316, %v318
        %v323 = vsel %vm321, %v318, %v316
        %324 = vrot.lane.b32.xlu0 %v313, 16
        %v325 = vpop.permute.xlu0 %324
        %326 = vrot.lane.b32.xlu0 %v314, 16
        %v327 = vpop.permute.xlu0 %326
        %vm328 = vcmp.lt.s32.totalorder %v320, 16
        %v329 = vsel %vm328, %v325, %v327
        %v330 = vsel %vm328, %v327, %v325
        %331 = vrot.lane.b32.xlu0 %v313, 15
        %v332 = vpop.permute.xlu0 %331
        %333 = vrot.lane.b32.xlu0 %v314, 15
        %v334 = vpop.permute.xlu0 %333
        %vm335 = vcmp.lt.s32.totalorder %v320, 15
        %v336 = vsel %vm335, %v332, %v334
        %v337 = vsel %vm335, %v334, %v332
        %338 = vrot.lane.b32.xlu0 %v313, 1
        %v339 = vpop.permute.xlu0 %338
        %340 = vrot.lane.b32.xlu0 %v314, 1
        %v341 = vpop.permute.xlu0 %340
        %vm342 = vcmp.lt.s32.totalorder %v320, 1
        %v343 = vsel %vm342, %v339, %v341
        %v344 = vsel %vm342, %v341, %v339
        %345 = vrot.lane.b32.xlu0 %v313, 127
        %v346 = vpop.permute.xlu0 %345
        %347 = vrot.lane.b32.xlu0 %v314, 127
        %v348 = vpop.permute.xlu0 %347
        %vm349 = vcmp.lt.s32.totalorder %v320, 127
        %v350 = vsel %vm349, %v346, %v348
        %v351 = vsel %vm349, %v348, %v346
        %352 = vrot.lane.b32.xlu0 %v313, 113
        %v353 = vpop.permute.xlu0 %352
        %354 = vrot.lane.b32.xlu0 %v314, 113
        %v355 = vpop.permute.xlu0 %354
        %vm356 = vcmp.lt.s32.totalorder %v320, 113
        %v357 = vsel %vm356, %v353, %v355
        %v358 = vsel %vm356, %v355, %v353
        %359 = vrot.lane.b32.xlu0 %v313, 112
        %v360 = vpop.permute.xlu0 %359
        %361 = vrot.lane.b32.xlu0 %v314, 112
        %v362 = vpop.permute.xlu0 %361
        %vm363 = vcmp.lt.s32.totalorder %v320, 112
        %v364 = vsel %vm363, %v360, %v362
        %v365 = vsel %vm363, %v362, %v360
        %366 = vrot.lane.b32.xlu0 %v313, 111
        %v367 = vpop.permute.xlu0 %366
        %368 = vrot.lane.b32.xlu0 %v314, 111
        %v369 = vpop.permute.xlu0 %368
        %vm370 = vcmp.lt.s32.totalorder %v320, 111
        %v371 = vsel %vm370, %v367, %v369
        %v372 = vsel %vm370, %v369, %v367
        %v373 = vld [vmem:[#allocation2] sm:$0xff]
        %v374 = vld [vmem:[#allocation2 + $0x8] sm:$0xff]
        %v375 = vmul.f32 %v323, %v373
        %v376 = vmul.f32 %v322, %v374
        %s377 = scalar_lea.vmem [#allocation2], 16
        %v378 = vld [vmem:[%s377] sm:$0xff]
        %v379 = vld [vmem:[%s377 + $0x8] sm:$0xff]
        %v380 = vmul.f32 %v330, %v378
        %v381 = vmul.f32 %v329, %v379
        %v382 = vadd.f32 %v375, %v380
        %v383 = vadd.f32 %v376, %v381
        %s384 = scalar_lea.vmem [#allocation2], 32
        %v385 = vld [vmem:[%s384] sm:$0xff]
        %v386 = vld [vmem:[%s384 + $0x8] sm:$0xff]
        %v387 = vmul.f32 %v337, %v385
        %v388 = vmul.f32 %v336, %v386
        %v389 = vadd.f32 %v382, %v387
        %v390 = vadd.f32 %v383, %v388
        %s391 = scalar_lea.vmem [#allocation2], 48
        %v392 = vld [vmem:[%s391] sm:$0xff]
        %v393 = vld [vmem:[%s391 + $0x8] sm:$0xff]
        %v394 = vmul.f32 %v344, %v392
        %v395 = vmul.f32 %v343, %v393
        %v396 = vadd.f32 %v389, %v394
        %v397 = vadd.f32 %v390, %v395
        %s398 = scalar_lea.vmem [#allocation2], 64
        %v399 = vld [vmem:[%s398] sm:$0xff]
        %v400 = vld [vmem:[%s398 + $0x8] sm:$0xff]
        %v401 = vmul.f32 %v313, %v399
        %v402 = vmul.f32 %v314, %v400
        %v403 = vadd.f32 %v396, %v401
        %v404 = vadd.f32 %v397, %v402
        %s405 = scalar_lea.vmem [#allocation2], 80
        %v406 = vld [vmem:[%s405] sm:$0xff]
        %v407 = vld [vmem:[%s405 + $0x8] sm:$0xff]
        %v408 = vmul.f32 %v350, %v406
        %v409 = vmul.f32 %v351, %v407
        %v410 = vadd.f32 %v403, %v408
        %v411 = vadd.f32 %v404, %v409
        %s412 = scalar_lea.vmem [#allocation2], 96
        %v413 = vld [vmem:[%s412] sm:$0xff]
        %v414 = vld [vmem:[%s412 + $0x8] sm:$0xff]
        %v415 = vmul.f32 %v357, %v413
        %v416 = vmul.f32 %v358, %v414
        %v417 = vadd.f32 %v410, %v415
        %v418 = vadd.f32 %v411, %v416
        %s419 = scalar_lea.vmem [#allocation2], 112
        %v420 = vld [vmem:[%s419] sm:$0xff]
        %v421 = vld [vmem:[%s419 + $0x8] sm:$0xff]
        %v422 = vmul.f32 %v364, %v420
        %v423 = vmul.f32 %v365, %v421
        %v424 = vadd.f32 %v417, %v422
        %v425 = vadd.f32 %v418, %v423
        %s426 = scalar_lea.vmem [#allocation2], 128
        %v427 = vld [vmem:[%s426] sm:$0xff]
        %v428 = vld [vmem:[%s426 + $0x8] sm:$0xff]
        %v429 = vmul.f32 %v371, %v427
        %v430 = vmul.f32 %v372, %v428
        %v431 = vadd.f32 %v424, %v429
        %v432 = vadd.f32 %v425, %v430
        %s433 = scalar_lea.vmem [#allocation2], 640
        %v434 = vld [vmem:[%s433] sm:$0xff]
        %v435 = vld [vmem:[%s433 + $0x8] sm:$0xff]
        %v436 = vmul.f32 %v431, %v434
        %v437 = vmul.f32 %v432, %v435
        %438 = vrot.lane.b32.xlu0 %v431, 34
        %v439 = vpop.permute.xlu0 %438
        %440 = vrot.lane.b32.xlu0 %v432, 34
        %v441 = vpop.permute.xlu0 %440
        %vm442 = vcmp.lt.s32.totalorder %v320, 34
        %v443 = vsel %vm442, %v439, %v441
        %v444 = vsel %vm442, %v441, %v439
        %s445 = scalar_lea.vmem [#allocation2], 576
        %v446 = vld [vmem:[%s445] sm:$0xff]
        %v447 = vld [vmem:[%s445 + $0x8] sm:$0xff]
        %v448 = vmul.f32 %v444, %v446
        %v449 = vmul.f32 %v443, %v447
        %v450 = vadd.f32 %v436, %v448
        %v451 = vadd.f32 %v437, %v449
        %452 = vrot.lane.b32.xlu0 %v431, 32
        %v453 = vpop.permute.xlu0 %452
        %454 = vrot.lane.b32.xlu0 %v432, 32
        %v455 = vpop.permute.xlu0 %454
        %vm456 = vcmp.lt.s32.totalorder %v320, 32
        %v457 = vsel %vm456, %v453, %v455
        %v458 = vsel %vm456, %v455, %v453
        %s459 = scalar_lea.vmem [#allocation2], 592
        %v460 = vld [vmem:[%s459] sm:$0xff]
        %v461 = vld [vmem:[%s459 + $0x8] sm:$0xff]
        %v462 = vmul.f32 %v458, %v460
        %v463 = vmul.f32 %v457, %v461
        %v464 = vadd.f32 %v450, %v462
        %v465 = vadd.f32 %v451, %v463
        %466 = vrot.lane.b32.xlu0 %v431, 30
        %v467 = vpop.permute.xlu0 %466
        %468 = vrot.lane.b32.xlu0 %v432, 30
        %v469 = vpop.permute.xlu0 %468
        %vm470 = vcmp.lt.s32.totalorder %v320, 30
        %v471 = vsel %vm470, %v467, %v469
        %v472 = vsel %vm470, %v469, %v467
        %s473 = scalar_lea.vmem [#allocation2], 608
        %v474 = vld [vmem:[%s473] sm:$0xff]
        %v475 = vld [vmem:[%s473 + $0x8] sm:$0xff]
        %v476 = vmul.f32 %v472, %v474
        %v477 = vmul.f32 %v471, %v475
        %v478 = vadd.f32 %v464, %v476
        %v479 = vadd.f32 %v465, %v477
        %480 = vrot.lane.b32.xlu0 %v431, 2
        %v481 = vpop.permute.xlu0 %480
        %482 = vrot.lane.b32.xlu0 %v432, 2
        %v483 = vpop.permute.xlu0 %482
        %vm484 = vcmp.lt.s32.totalorder %v320, 2
        %v485 = vsel %vm484, %v481, %v483
        %v486 = vsel %vm484, %v483, %v481
        %s487 = scalar_lea.vmem [#allocation2], 624
        %v488 = vld [vmem:[%s487] sm:$0xff]
        %v489 = vld [vmem:[%s487 + $0x8] sm:$0xff]
        %v490 = vmul.f32 %v486, %v488
        %v491 = vmul.f32 %v485, %v489
        %v492 = vadd.f32 %v478, %v490
        %v493 = vadd.f32 %v479, %v491
        %494 = vrot.lane.b32.xlu0 %v431, 126
        %v495 = vpop.permute.xlu0 %494
        %496 = vrot.lane.b32.xlu0 %v432, 126
        %v497 = vpop.permute.xlu0 %496
        %vm498 = vcmp.lt.s32.totalorder %v320, 126
        %v499 = vsel %vm498, %v495, %v497
        %v500 = vsel %vm498, %v497, %v495
        %s501 = scalar_lea.vmem [#allocation2], 656
        %v502 = vld [vmem:[%s501] sm:$0xff]
        %v503 = vld [vmem:[%s501 + $0x8] sm:$0xff]
        %v504 = vmul.f32 %v499, %v502
        %v505 = vmul.f32 %v500, %v503
        %v506 = vadd.f32 %v492, %v504
        %v507 = vadd.f32 %v493, %v505
        %508 = vrot.lane.b32.xlu0 %v431, 98
        %v509 = vpop.permute.xlu0 %508
        %510 = vrot.lane.b32.xlu0 %v432, 98
        %v511 = vpop.permute.xlu0 %510
        %vm512 = vcmp.lt.s32.totalorder %v320, 98
        %v513 = vsel %vm512, %v509, %v511
        %v514 = vsel %vm512, %v511, %v509
        %s515 = scalar_lea.vmem [#allocation2], 672
        %v516 = vld [vmem:[%s515] sm:$0xff]
        %v517 = vld [vmem:[%s515 + $0x8] sm:$0xff]
        %v518 = vmul.f32 %v513, %v516
        %v519 = vmul.f32 %v514, %v517
        %v520 = vadd.f32 %v506, %v518
        %v521 = vadd.f32 %v507, %v519
        %522 = vrot.lane.b32.xlu0 %v431, 96
        %v523 = vpop.permute.xlu0 %522
        %524 = vrot.lane.b32.xlu0 %v432, 96
        %v525 = vpop.permute.xlu0 %524
        %vm526 = vcmp.lt.s32.totalorder %v320, 96
        %v527 = vsel %vm526, %v523, %v525
        %v528 = vsel %vm526, %v525, %v523
        %s529 = scalar_lea.vmem [#allocation2], 688
        %v530 = vld [vmem:[%s529] sm:$0xff]
        %v531 = vld [vmem:[%s529 + $0x8] sm:$0xff]
        %v532 = vmul.f32 %v527, %v530
        %v533 = vmul.f32 %v528, %v531
        %v534 = vadd.f32 %v520, %v532
        %v535 = vadd.f32 %v521, %v533
        %536 = vrot.lane.b32.xlu0 %v431, 94
        %v537 = vpop.permute.xlu0 %536
        %538 = vrot.lane.b32.xlu0 %v432, 94
        %v539 = vpop.permute.xlu0 %538
        %vm540 = vcmp.lt.s32.totalorder %v320, 94
        %v541 = vsel %vm540, %v537, %v539
        %v542 = vsel %vm540, %v539, %v537
        %s543 = scalar_lea.vmem [#allocation2], 704
        %v544 = vld [vmem:[%s543] sm:$0xff]
        %v545 = vld [vmem:[%s543 + $0x8] sm:$0xff]
        %v546 = vmul.f32 %v541, %v544
        %v547 = vmul.f32 %v542, %v545
        %v548 = vadd.f32 %v534, %v546
        %v549 = vadd.f32 %v535, %v547
        %550 = vset.pattern.permute.xlu0 2
        %551 = vperm.xlu0 %550, %v254
        %v552 = vpop.permute.xlu0 %551
        %v554 = vadd.f32 %v548, %v552
        %v555 = vadd.f32 %v549, %v552
        %vm556 = vcmp.gt.f32.partialorder %v554, 0.0
        %vm557 = vcmp.gt.f32.partialorder %v555, 0.0
        %558 = vset.pattern.permute.xlu0 3
        %559 = vperm.xlu0 %558, %v254
        %v560 = vpop.permute.xlu0 %559
        %v562 = vmul.f32 %v554, %v560
        %v563 = vmul.f32 %v555, %v560
        %v564 = vsel %vm556, %v554, %v562
        %v565 = vsel %vm557, %v555, %v563
        %v566 = vpack.c.bf16 %v564, %v564
        %v567 = vpack.c.bf16 %v565, %v565
        %s568 = scalar_lea.vmem [#allocation2], 144
        %v569 = vld [vmem:[%s568] sm:$0xff]
        %v570 = vld [vmem:[%s568 + $0x8] sm:$0xff]
        %v571 = vmul.f32 %v323, %v569
        %v572 = vmul.f32 %v322, %v570
        %s573 = scalar_lea.vmem [#allocation2], 160
        %v574 = vld [vmem:[%s573] sm:$0xff]
        %v575 = vld [vmem:[%s573 + $0x8] sm:$0xff]
        %v576 = vmul.f32 %v330, %v574
        %v577 = vmul.f32 %v329, %v575
        %v578 = vadd.f32 %v571, %v576
        %v579 = vadd.f32 %v572, %v577
        %s580 = scalar_lea.vmem [#allocation2], 176
        %v581 = vld [vmem:[%s580] sm:$0xff]
        %v582 = vld [vmem:[%s580 + $0x8] sm:$0xff]
        %v583 = vmul.f32 %v337, %v581
        %v584 = vmul.f32 %v336, %v582
        %v585 = vadd.f32 %v578, %v583
        %v586 = vadd.f32 %v579, %v584
        %s587 = scalar_lea.vmem [#allocation2], 192
        %v588 = vld [vmem:[%s587] sm:$0xff]
        %v589 = vld [vmem:[%s587 + $0x8] sm:$0xff]
        %v590 = vmul.f32 %v344, %v588
        %v591 = vmul.f32 %v343, %v589
        %v592 = vadd.f32 %v585, %v590
        %v593 = vadd.f32 %v586, %v591
        %s594 = scalar_lea.vmem [#allocation2], 208
        %v595 = vld [vmem:[%s594] sm:$0xff]
        %v596 = vld [vmem:[%s594 + $0x8] sm:$0xff]
        %v597 = vmul.f32 %v313, %v595
        %v598 = vmul.f32 %v314, %v596
        %v599 = vadd.f32 %v592, %v597
        %v600 = vadd.f32 %v593, %v598
        %s601 = scalar_lea.vmem [#allocation2], 224
        %v602 = vld [vmem:[%s601] sm:$0xff]
        %v603 = vld [vmem:[%s601 + $0x8] sm:$0xff]
        %v604 = vmul.f32 %v350, %v602
        %v605 = vmul.f32 %v351, %v603
        %v606 = vadd.f32 %v599, %v604
        %v607 = vadd.f32 %v600, %v605
        %s608 = scalar_lea.vmem [#allocation2], 240
        %v609 = vld [vmem:[%s608] sm:$0xff]
        %v610 = vld [vmem:[%s608 + $0x8] sm:$0xff]
        %v611 = vmul.f32 %v357, %v609
        %v612 = vmul.f32 %v358, %v610
        %v613 = vadd.f32 %v606, %v611
        %v614 = vadd.f32 %v607, %v612
        %s615 = scalar_lea.vmem [#allocation2], 256
        %v616 = vld [vmem:[%s615] sm:$0xff]
        %v617 = vld [vmem:[%s615 + $0x8] sm:$0xff]
        %v618 = vmul.f32 %v364, %v616
        %v619 = vmul.f32 %v365, %v617
        %v620 = vadd.f32 %v613, %v618
        %v621 = vadd.f32 %v614, %v619
        %s622 = scalar_lea.vmem [#allocation2], 272
        %v623 = vld [vmem:[%s622] sm:$0xff]
        %v624 = vld [vmem:[%s622 + $0x8] sm:$0xff]
        %v625 = vmul.f32 %v371, %v623
        %v626 = vmul.f32 %v372, %v624
        %v627 = vadd.f32 %v620, %v625
        %v628 = vadd.f32 %v621, %v626
        %s629 = scalar_lea.vmem [#allocation2], 784
        %v630 = vld [vmem:[%s629] sm:$0xff]
        %v631 = vld [vmem:[%s629 + $0x8] sm:$0xff]
        %v632 = vmul.f32 %v627, %v630
        %v633 = vmul.f32 %v628, %v631
        %634 = vrot.lane.b32.xlu0 %v627, 34
        %v635 = vpop.permute.xlu0 %634
        %636 = vrot.lane.b32.xlu0 %v628, 34
        %v637 = vpop.permute.xlu0 %636
        %v638 = vsel %vm442, %v635, %v637
        %v639 = vsel %vm442, %v637, %v635
        %s640 = scalar_lea.vmem [#allocation2], 720
        %v641 = vld [vmem:[%s640] sm:$0xff]
        %v642 = vld [vmem:[%s640 + $0x8] sm:$0xff]
        %v643 = vmul.f32 %v639, %v641
        %v644 = vmul.f32 %v638, %v642
        %v645 = vadd.f32 %v632, %v643
        %v646 = vadd.f32 %v633, %v644
        %647 = vrot.lane.b32.xlu0 %v627, 32
        %v648 = vpop.permute.xlu0 %647
        %649 = vrot.lane.b32.xlu0 %v628, 32
        %v650 = vpop.permute.xlu0 %649
        %v651 = vsel %vm456, %v648, %v650
        %v652 = vsel %vm456, %v650, %v648
        %s653 = scalar_lea.vmem [#allocation2], 736
        %v654 = vld [vmem:[%s653] sm:$0xff]
        %v655 = vld [vmem:[%s653 + $0x8] sm:$0xff]
        %v656 = vmul.f32 %v652, %v654
        %v657 = vmul.f32 %v651, %v655
        %v658 = vadd.f32 %v645, %v656
        %v659 = vadd.f32 %v646, %v657
        %660 = vrot.lane.b32.xlu0 %v627, 30
        %v661 = vpop.permute.xlu0 %660
        %662 = vrot.lane.b32.xlu0 %v628, 30
        %v663 = vpop.permute.xlu0 %662
        %v664 = vsel %vm470, %v661, %v663
        %v665 = vsel %vm470, %v663, %v661
        %s666 = scalar_lea.vmem [#allocation2], 752
        %v667 = vld [vmem:[%s666] sm:$0xff]
        %v668 = vld [vmem:[%s666 + $0x8] sm:$0xff]
        %v669 = vmul.f32 %v665, %v667
        %v670 = vmul.f32 %v664, %v668
        %v671 = vadd.f32 %v658, %v669
        %v672 = vadd.f32 %v659, %v670
        %673 = vrot.lane.b32.xlu0 %v627, 2
        %v674 = vpop.permute.xlu0 %673
        %675 = vrot.lane.b32.xlu0 %v628, 2
        %v676 = vpop.permute.xlu0 %675
        %v677 = vsel %vm484, %v674, %v676
        %v678 = vsel %vm484, %v676, %v674
        %s679 = scalar_lea.vmem [#allocation2], 768
        %v680 = vld [vmem:[%s679] sm:$0xff]
        %v681 = vld [vmem:[%s679 + $0x8] sm:$0xff]
        %v682 = vmul.f32 %v678, %v680
        %v683 = vmul.f32 %v677, %v681
        %v684 = vadd.f32 %v671, %v682
        %v685 = vadd.f32 %v672, %v683
        %686 = vrot.lane.b32.xlu0 %v627, 126
        %v687 = vpop.permute.xlu0 %686
        %688 = vrot.lane.b32.xlu0 %v628, 126
        %v689 = vpop.permute.xlu0 %688
        %v690 = vsel %vm498, %v687, %v689
        %v691 = vsel %vm498, %v689, %v687
        %s692 = scalar_lea.vmem [#allocation2], 800
        %v693 = vld [vmem:[%s692] sm:$0xff]
        %v694 = vld [vmem:[%s692 + $0x8] sm:$0xff]
        %v695 = vmul.f32 %v690, %v693
        %v696 = vmul.f32 %v691, %v694
        %v697 = vadd.f32 %v684, %v695
        %v698 = vadd.f32 %v685, %v696
        %699 = vrot.lane.b32.xlu0 %v627, 98
        %v700 = vpop.permute.xlu0 %699
        %701 = vrot.lane.b32.xlu0 %v628, 98
        %v702 = vpop.permute.xlu0 %701
        %v703 = vsel %vm512, %v700, %v702
        %v704 = vsel %vm512, %v702, %v700
        %s705 = scalar_lea.vmem [#allocation2], 816
        %v706 = vld [vmem:[%s705] sm:$0xff]
        %v707 = vld [vmem:[%s705 + $0x8] sm:$0xff]
        %v708 = vmul.f32 %v703, %v706
        %v709 = vmul.f32 %v704, %v707
        %v710 = vadd.f32 %v697, %v708
        %v711 = vadd.f32 %v698, %v709
        %712 = vrot.lane.b32.xlu0 %v627, 96
        %v713 = vpop.permute.xlu0 %712
        %714 = vrot.lane.b32.xlu0 %v628, 96
        %v715 = vpop.permute.xlu0 %714
        %v716 = vsel %vm526, %v713, %v715
        %v717 = vsel %vm526, %v715, %v713
        %s718 = scalar_lea.vmem [#allocation2], 832
        %v719 = vld [vmem:[%s718] sm:$0xff]
        %v720 = vld [vmem:[%s718 + $0x8] sm:$0xff]
        %v721 = vmul.f32 %v716, %v719
        %v722 = vmul.f32 %v717, %v720
        %v723 = vadd.f32 %v710, %v721
        %v724 = vadd.f32 %v711, %v722
        %725 = vrot.lane.b32.xlu0 %v627, 94
        %v726 = vpop.permute.xlu0 %725
        %727 = vrot.lane.b32.xlu0 %v628, 94
        %v728 = vpop.permute.xlu0 %727
        %v729 = vsel %vm540, %v726, %v728
        %v730 = vsel %vm540, %v728, %v726
        %s731 = scalar_lea.vmem [#allocation2], 848
        %v732 = vld [vmem:[%s731] sm:$0xff]
        %v733 = vld [vmem:[%s731 + $0x8] sm:$0xff]
        %v734 = vmul.f32 %v729, %v732
        %v735 = vmul.f32 %v730, %v733
        %v736 = vadd.f32 %v723, %v734
        %v737 = vadd.f32 %v724, %v735
        %v738 = vld [vmem:[%s4 + $0x8] sm:$0xff]
        %740 = vset.pattern.permute.xlu0 2
        %741 = vperm.xlu0 %740, %v738
        %v742 = vpop.permute.xlu0 %741
        %v744 = vadd.f32 %v736, %v742
        %v745 = vadd.f32 %v737, %v742
        %vm746 = vcmp.gt.f32.partialorder %v744, 0.0
        %vm747 = vcmp.gt.f32.partialorder %v745, 0.0
        %748 = vset.pattern.permute.xlu0 3
        %749 = vperm.xlu0 %748, %v738
        %v750 = vpop.permute.xlu0 %749
        %v752 = vmul.f32 %v744, %v750
        %v753 = vmul.f32 %v745, %v750
        %v754 = vsel %vm746, %v744, %v752
        %v755 = vsel %vm747, %v745, %v753
        %v756 = vpack.c.bf16 %v754, %v754
        %v757 = vpack.c.bf16 %v755, %v755
        %s758 = scalar_lea.vmem [#allocation2], 288
        %v759 = vld [vmem:[%s758] sm:$0xff]
        %v760 = vld [vmem:[%s758 + $0x8] sm:$0xff]
        %v761 = vmul.f32 %v323, %v759
        %v762 = vmul.f32 %v322, %v760
        %s763 = scalar_lea.vmem [#allocation2], 304
        %v764 = vld [vmem:[%s763] sm:$0xff]
        %v765 = vld [vmem:[%s763 + $0x8] sm:$0xff]
        %v766 = vmul.f32 %v330, %v764
        %v767 = vmul.f32 %v329, %v765
        %v768 = vadd.f32 %v761, %v766
        %v769 = vadd.f32 %v762, %v767
        %s770 = scalar_lea.vmem [#allocation2], 320
        %v771 = vld [vmem:[%s770] sm:$0xff]
        %v772 = vld [vmem:[%s770 + $0x8] sm:$0xff]
        %v773 = vmul.f32 %v337, %v771
        %v774 = vmul.f32 %v336, %v772
        %v775 = vadd.f32 %v768, %v773
        %v776 = vadd.f32 %v769, %v774
        %s777 = scalar_lea.vmem [#allocation2], 336
        %v778 = vld [vmem:[%s777] sm:$0xff]
        %v779 = vld [vmem:[%s777 + $0x8] sm:$0xff]
        %v780 = vmul.f32 %v344, %v778
        %v781 = vmul.f32 %v343, %v779
        %v782 = vadd.f32 %v775, %v780
        %v783 = vadd.f32 %v776, %v781
        %s784 = scalar_lea.vmem [#allocation2], 352
        %v785 = vld [vmem:[%s784] sm:$0xff]
        %v786 = vld [vmem:[%s784 + $0x8] sm:$0xff]
        %v787 = vmul.f32 %v313, %v785
        %v788 = vmul.f32 %v314, %v786
        %v789 = vadd.f32 %v782, %v787
        %v790 = vadd.f32 %v783, %v788
        %s791 = scalar_lea.vmem [#allocation2], 368
        %v792 = vld [vmem:[%s791] sm:$0xff]
        %v793 = vld [vmem:[%s791 + $0x8] sm:$0xff]
        %v794 = vmul.f32 %v350, %v792
        %v795 = vmul.f32 %v351, %v793
        %v796 = vadd.f32 %v789, %v794
        %v797 = vadd.f32 %v790, %v795
        %s798 = scalar_lea.vmem [#allocation2], 384
        %v799 = vld [vmem:[%s798] sm:$0xff]
        %v800 = vld [vmem:[%s798 + $0x8] sm:$0xff]
        %v801 = vmul.f32 %v357, %v799
        %v802 = vmul.f32 %v358, %v800
        %v803 = vadd.f32 %v796, %v801
        %v804 = vadd.f32 %v797, %v802
        %s805 = scalar_lea.vmem [#allocation2], 400
        %v806 = vld [vmem:[%s805] sm:$0xff]
        %v807 = vld [vmem:[%s805 + $0x8] sm:$0xff]
        %v808 = vmul.f32 %v364, %v806
        %v809 = vmul.f32 %v365, %v807
        %v810 = vadd.f32 %v803, %v808
        %v811 = vadd.f32 %v804, %v809
        %s812 = scalar_lea.vmem [#allocation2], 416
        %v813 = vld [vmem:[%s812] sm:$0xff]
        %v814 = vld [vmem:[%s812 + $0x8] sm:$0xff]
        %v815 = vmul.f32 %v371, %v813
        %v816 = vmul.f32 %v372, %v814
        %v817 = vadd.f32 %v810, %v815
        %v818 = vadd.f32 %v811, %v816
        %s819 = scalar_lea.vmem [#allocation2], 928
        %v820 = vld [vmem:[%s819] sm:$0xff]
        %v821 = vld [vmem:[%s819 + $0x8] sm:$0xff]
        %v822 = vmul.f32 %v817, %v820
        %v823 = vmul.f32 %v818, %v821
        %824 = vrot.lane.b32.xlu0 %v817, 34
        %v825 = vpop.permute.xlu0 %824
        %826 = vrot.lane.b32.xlu0 %v818, 34
        %v827 = vpop.permute.xlu0 %826
        %v828 = vsel %vm442, %v825, %v827
        %v829 = vsel %vm442, %v827, %v825
        %s830 = scalar_lea.vmem [#allocation2], 864
        %v831 = vld [vmem:[%s830] sm:$0xff]
        %v832 = vld [vmem:[%s830 + $0x8] sm:$0xff]
        %v833 = vmul.f32 %v829, %v831
        %v834 = vmul.f32 %v828, %v832
        %v835 = vadd.f32 %v822, %v833
        %v836 = vadd.f32 %v823, %v834
        %837 = vrot.lane.b32.xlu0 %v817, 32
        %v838 = vpop.permute.xlu0 %837
        %839 = vrot.lane.b32.xlu0 %v818, 32
        %v840 = vpop.permute.xlu0 %839
        %v841 = vsel %vm456, %v838, %v840
        %v842 = vsel %vm456, %v840, %v838
        %s843 = scalar_lea.vmem [#allocation2], 880
        %v844 = vld [vmem:[%s843] sm:$0xff]
        %v845 = vld [vmem:[%s843 + $0x8] sm:$0xff]
        %v846 = vmul.f32 %v842, %v844
        %v847 = vmul.f32 %v841, %v845
        %v848 = vadd.f32 %v835, %v846
        %v849 = vadd.f32 %v836, %v847
        %850 = vrot.lane.b32.xlu0 %v817, 30
        %v851 = vpop.permute.xlu0 %850
        %852 = vrot.lane.b32.xlu0 %v818, 30
        %v853 = vpop.permute.xlu0 %852
        %v854 = vsel %vm470, %v851, %v853
        %v855 = vsel %vm470, %v853, %v851
        %s856 = scalar_lea.vmem [#allocation2], 896
        %v857 = vld [vmem:[%s856] sm:$0xff]
        %v858 = vld [vmem:[%s856 + $0x8] sm:$0xff]
        %v859 = vmul.f32 %v855, %v857
        %v860 = vmul.f32 %v854, %v858
        %v861 = vadd.f32 %v848, %v859
        %v862 = vadd.f32 %v849, %v860
        %863 = vrot.lane.b32.xlu0 %v817, 2
        %v864 = vpop.permute.xlu0 %863
        %865 = vrot.lane.b32.xlu0 %v818, 2
        %v866 = vpop.permute.xlu0 %865
        %v867 = vsel %vm484, %v864, %v866
        %v868 = vsel %vm484, %v866, %v864
        %s869 = scalar_lea.vmem [#allocation2], 912
        %v870 = vld [vmem:[%s869] sm:$0xff]
        %v871 = vld [vmem:[%s869 + $0x8] sm:$0xff]
        %v872 = vmul.f32 %v868, %v870
        %v873 = vmul.f32 %v867, %v871
        %v874 = vadd.f32 %v861, %v872
        %v875 = vadd.f32 %v862, %v873
        %876 = vrot.lane.b32.xlu0 %v817, 126
        %v877 = vpop.permute.xlu0 %876
        %878 = vrot.lane.b32.xlu0 %v818, 126
        %v879 = vpop.permute.xlu0 %878
        %v880 = vsel %vm498, %v877, %v879
        %v881 = vsel %vm498, %v879, %v877
        %s882 = scalar_lea.vmem [#allocation2], 944
        %v883 = vld [vmem:[%s882] sm:$0xff]
        %v884 = vld [vmem:[%s882 + $0x8] sm:$0xff]
        %v885 = vmul.f32 %v880, %v883
        %v886 = vmul.f32 %v881, %v884
        %v887 = vadd.f32 %v874, %v885
        %v888 = vadd.f32 %v875, %v886
        %889 = vrot.lane.b32.xlu0 %v817, 98
        %v890 = vpop.permute.xlu0 %889
        %891 = vrot.lane.b32.xlu0 %v818, 98
        %v892 = vpop.permute.xlu0 %891
        %v893 = vsel %vm512, %v890, %v892
        %v894 = vsel %vm512, %v892, %v890
        %s895 = scalar_lea.vmem [#allocation2], 960
        %v896 = vld [vmem:[%s895] sm:$0xff]
        %v897 = vld [vmem:[%s895 + $0x8] sm:$0xff]
        %v898 = vmul.f32 %v893, %v896
        %v899 = vmul.f32 %v894, %v897
        %v900 = vadd.f32 %v887, %v898
        %v901 = vadd.f32 %v888, %v899
        %902 = vrot.lane.b32.xlu0 %v817, 96
        %v903 = vpop.permute.xlu0 %902
        %904 = vrot.lane.b32.xlu0 %v818, 96
        %v905 = vpop.permute.xlu0 %904
        %v906 = vsel %vm526, %v903, %v905
        %v907 = vsel %vm526, %v905, %v903
        %s908 = scalar_lea.vmem [#allocation2], 976
        %v909 = vld [vmem:[%s908] sm:$0xff]
        %v910 = vld [vmem:[%s908 + $0x8] sm:$0xff]
        %v911 = vmul.f32 %v906, %v909
        %v912 = vmul.f32 %v907, %v910
        %v913 = vadd.f32 %v900, %v911
        %v914 = vadd.f32 %v901, %v912
        %915 = vrot.lane.b32.xlu0 %v817, 94
        %v916 = vpop.permute.xlu0 %915
        %917 = vrot.lane.b32.xlu0 %v818, 94
        %v918 = vpop.permute.xlu0 %917
        %v919 = vsel %vm540, %v916, %v918
        %v920 = vsel %vm540, %v918, %v916
        %s921 = scalar_lea.vmem [#allocation2], 992
        %v922 = vld [vmem:[%s921] sm:$0xff]
        %v923 = vld [vmem:[%s921 + $0x8] sm:$0xff]
        %v924 = vmul.f32 %v919, %v922
        %v925 = vmul.f32 %v920, %v923
        %v926 = vadd.f32 %v913, %v924
        %v927 = vadd.f32 %v914, %v925
        %v928 = vld [vmem:[%s4 + $0x10] sm:$0xff]
        %930 = vset.pattern.permute.xlu0 2
        %931 = vperm.xlu0 %930, %v928
        %v932 = vpop.permute.xlu0 %931
        %v934 = vadd.f32 %v926, %v932
        %v935 = vadd.f32 %v927, %v932
        %vm936 = vcmp.gt.f32.partialorder %v934, 0.0
        %vm937 = vcmp.gt.f32.partialorder %v935, 0.0
        %938 = vset.pattern.permute.xlu0 3
        %939 = vperm.xlu0 %938, %v928
        %v940 = vpop.permute.xlu0 %939
        %v942 = vmul.f32 %v934, %v940
        %v943 = vmul.f32 %v935, %v940
        %v944 = vsel %vm936, %v934, %v942
        %v945 = vsel %vm937, %v935, %v943
        %v946 = vpack.c.bf16 %v944, %v944
        %v947 = vpack.c.bf16 %v945, %v945
        %s948 = scalar_lea.vmem [#allocation2], 432
        %v949 = vld [vmem:[%s948] sm:$0xff]
        %v950 = vld [vmem:[%s948 + $0x8] sm:$0xff]
        %v951 = vmul.f32 %v323, %v949
        %v952 = vmul.f32 %v322, %v950
        %s953 = scalar_lea.vmem [#allocation2], 448
        %v954 = vld [vmem:[%s953] sm:$0xff]
        %v955 = vld [vmem:[%s953 + $0x8] sm:$0xff]
        %v956 = vmul.f32 %v330, %v954
        %v957 = vmul.f32 %v329, %v955
        %v958 = vadd.f32 %v951, %v956
        %v959 = vadd.f32 %v952, %v957
        %s960 = scalar_lea.vmem [#allocation2], 464
        %v961 = vld [vmem:[%s960] sm:$0xff]
        %v962 = vld [vmem:[%s960 + $0x8] sm:$0xff]
        %v963 = vmul.f32 %v337, %v961
        %v964 = vmul.f32 %v336, %v962
        %v965 = vadd.f32 %v958, %v963
        %v966 = vadd.f32 %v959, %v964
        %s967 = scalar_lea.vmem [#allocation2], 480
        %v968 = vld [vmem:[%s967] sm:$0xff]
        %v969 = vld [vmem:[%s967 + $0x8] sm:$0xff]
        %v970 = vmul.f32 %v344, %v968
        %v971 = vmul.f32 %v343, %v969
        %v972 = vadd.f32 %v965, %v970
        %v973 = vadd.f32 %v966, %v971
        %s974 = scalar_lea.vmem [#allocation2], 496
        %v975 = vld [vmem:[%s974] sm:$0xff]
        %v976 = vld [vmem:[%s974 + $0x8] sm:$0xff]
        %v977 = vmul.f32 %v313, %v975
        %v978 = vmul.f32 %v314, %v976
        %v979 = vadd.f32 %v972, %v977
        %v980 = vadd.f32 %v973, %v978
        %s981 = scalar_lea.vmem [#allocation2], 512
        %v982 = vld [vmem:[%s981] sm:$0xff]
        %v983 = vld [vmem:[%s981 + $0x8] sm:$0xff]
        %v984 = vmul.f32 %v350, %v982
        %v985 = vmul.f32 %v351, %v983
        %v986 = vadd.f32 %v979, %v984
        %v987 = vadd.f32 %v980, %v985
        %s988 = scalar_lea.vmem [#allocation2], 528
        %v989 = vld [vmem:[%s988] sm:$0xff]
        %v990 = vld [vmem:[%s988 + $0x8] sm:$0xff]
        %v991 = vmul.f32 %v357, %v989
        %v992 = vmul.f32 %v358, %v990
        %v993 = vadd.f32 %v986, %v991
        %v994 = vadd.f32 %v987, %v992
        %s995 = scalar_lea.vmem [#allocation2], 544
        %v996 = vld [vmem:[%s995] sm:$0xff]
        %v997 = vld [vmem:[%s995 + $0x8] sm:$0xff]
        %v998 = vmul.f32 %v364, %v996
        %v999 = vmul.f32 %v365, %v997
        %v1000 = vadd.f32 %v993, %v998
        %v1001 = vadd.f32 %v994, %v999
        %s1002 = scalar_lea.vmem [#allocation2], 560
        %v1003 = vld [vmem:[%s1002] sm:$0xff]
        %v1004 = vld [vmem:[%s1002 + $0x8] sm:$0xff]
        %v1005 = vmul.f32 %v371, %v1003
        %v1006 = vmul.f32 %v372, %v1004
        %v1007 = vadd.f32 %v1000, %v1005
        %v1008 = vadd.f32 %v1001, %v1006
        %s1009 = scalar_lea.vmem [#allocation2], 1072
        %v1010 = vld [vmem:[%s1009] sm:$0xff]
        %v1011 = vld [vmem:[%s1009 + $0x8] sm:$0xff]
        %v1012 = vmul.f32 %v1007, %v1010
        %v1013 = vmul.f32 %v1008, %v1011
        %1014 = vrot.lane.b32.xlu0 %v1007, 34
        %v1015 = vpop.permute.xlu0 %1014
        %1016 = vrot.lane.b32.xlu0 %v1008, 34
        %v1017 = vpop.permute.xlu0 %1016
        %v1018 = vsel %vm442, %v1015, %v1017
        %v1019 = vsel %vm442, %v1017, %v1015
        %s1020 = scalar_lea.vmem [#allocation2], 1008
        %v1021 = vld [vmem:[%s1020] sm:$0xff]
        %v1022 = vld [vmem:[%s1020 + $0x8] sm:$0xff]
        %v1023 = vmul.f32 %v1019, %v1021
        %v1024 = vmul.f32 %v1018, %v1022
        %v1025 = vadd.f32 %v1012, %v1023
        %v1026 = vadd.f32 %v1013, %v1024
        %1027 = vrot.lane.b32.xlu0 %v1007, 32
        %v1028 = vpop.permute.xlu0 %1027
        %1029 = vrot.lane.b32.xlu0 %v1008, 32
        %v1030 = vpop.permute.xlu0 %1029
        %v1031 = vsel %vm456, %v1028, %v1030
        %v1032 = vsel %vm456, %v1030, %v1028
        %s1033 = scalar_lea.vmem [#allocation2], 1024
        %v1034 = vld [vmem:[%s1033] sm:$0xff]
        %v1035 = vld [vmem:[%s1033 + $0x8] sm:$0xff]
        %v1036 = vmul.f32 %v1032, %v1034
        %v1037 = vmul.f32 %v1031, %v1035
        %v1038 = vadd.f32 %v1025, %v1036
        %v1039 = vadd.f32 %v1026, %v1037
        %1040 = vrot.lane.b32.xlu0 %v1007, 30
        %v1041 = vpop.permute.xlu0 %1040
        %1042 = vrot.lane.b32.xlu0 %v1008, 30
        %v1043 = vpop.permute.xlu0 %1042
        %v1044 = vsel %vm470, %v1041, %v1043
        %v1045 = vsel %vm470, %v1043, %v1041
        %s1046 = scalar_lea.vmem [#allocation2], 1040
        %v1047 = vld [vmem:[%s1046] sm:$0xff]
        %v1048 = vld [vmem:[%s1046 + $0x8] sm:$0xff]
        %v1049 = vmul.f32 %v1045, %v1047
        %v1050 = vmul.f32 %v1044, %v1048
        %v1051 = vadd.f32 %v1038, %v1049
        %v1052 = vadd.f32 %v1039, %v1050
        %1053 = vrot.lane.b32.xlu0 %v1007, 2
        %v1054 = vpop.permute.xlu0 %1053
        %1055 = vrot.lane.b32.xlu0 %v1008, 2
        %v1056 = vpop.permute.xlu0 %1055
        %v1057 = vsel %vm484, %v1054, %v1056
        %v1058 = vsel %vm484, %v1056, %v1054
        %s1059 = scalar_lea.vmem [#allocation2], 1056
        %v1060 = vld [vmem:[%s1059] sm:$0xff]
        %v1061 = vld [vmem:[%s1059 + $0x8] sm:$0xff]
        %v1062 = vmul.f32 %v1058, %v1060
        %v1063 = vmul.f32 %v1057, %v1061
        %v1064 = vadd.f32 %v1051, %v1062
        %v1065 = vadd.f32 %v1052, %v1063
        %1066 = vrot.lane.b32.xlu0 %v1007, 126
        %v1067 = vpop.permute.xlu0 %1066
        %1068 = vrot.lane.b32.xlu0 %v1008, 126
        %v1069 = vpop.permute.xlu0 %1068
        %v1070 = vsel %vm498, %v1067, %v1069
        %v1071 = vsel %vm498, %v1069, %v1067
        %s1072 = scalar_lea.vmem [#allocation2], 1088
        %v1073 = vld [vmem:[%s1072] sm:$0xff]
        %v1074 = vld [vmem:[%s1072 + $0x8] sm:$0xff]
        %v1075 = vmul.f32 %v1070, %v1073
        %v1076 = vmul.f32 %v1071, %v1074
        %v1077 = vadd.f32 %v1064, %v1075
        %v1078 = vadd.f32 %v1065, %v1076
        %1079 = vrot.lane.b32.xlu0 %v1007, 98
        %v1080 = vpop.permute.xlu0 %1079
        %1081 = vrot.lane.b32.xlu0 %v1008, 98
        %v1082 = vpop.permute.xlu0 %1081
        %v1083 = vsel %vm512, %v1080, %v1082
        %v1084 = vsel %vm512, %v1082, %v1080
        %s1085 = scalar_lea.vmem [#allocation2], 1104
        %v1086 = vld [vmem:[%s1085] sm:$0xff]
        %v1087 = vld [vmem:[%s1085 + $0x8] sm:$0xff]
        %v1088 = vmul.f32 %v1083, %v1086
        %v1089 = vmul.f32 %v1084, %v1087
        %v1090 = vadd.f32 %v1077, %v1088
        %v1091 = vadd.f32 %v1078, %v1089
        %1092 = vrot.lane.b32.xlu0 %v1007, 96
        %v1093 = vpop.permute.xlu0 %1092
        %1094 = vrot.lane.b32.xlu0 %v1008, 96
        %v1095 = vpop.permute.xlu0 %1094
        %v1096 = vsel %vm526, %v1093, %v1095
        %v1097 = vsel %vm526, %v1095, %v1093
        %s1098 = scalar_lea.vmem [#allocation2], 1120
        %v1099 = vld [vmem:[%s1098] sm:$0xff]
        %v1100 = vld [vmem:[%s1098 + $0x8] sm:$0xff]
        %v1101 = vmul.f32 %v1096, %v1099
        %v1102 = vmul.f32 %v1097, %v1100
        %v1103 = vadd.f32 %v1090, %v1101
        %v1104 = vadd.f32 %v1091, %v1102
        %1105 = vrot.lane.b32.xlu0 %v1007, 94
        %v1106 = vpop.permute.xlu0 %1105
        %1107 = vrot.lane.b32.xlu0 %v1008, 94
        %v1108 = vpop.permute.xlu0 %1107
        %v1109 = vsel %vm540, %v1106, %v1108
        %v1110 = vsel %vm540, %v1108, %v1106
        %s1111 = scalar_lea.vmem [#allocation2], 1136
        %v1112 = vld [vmem:[%s1111] sm:$0xff]
        %v1113 = vld [vmem:[%s1111 + $0x8] sm:$0xff]
        %v1114 = vmul.f32 %v1109, %v1112
        %v1115 = vmul.f32 %v1110, %v1113
        %v1116 = vadd.f32 %v1103, %v1114
        %v1117 = vadd.f32 %v1104, %v1115
        %v1118 = vld [vmem:[%s4 + $0x18] sm:$0xff]
        %1120 = vset.pattern.permute.xlu0 2
        %1121 = vperm.xlu0 %1120, %v1118
        %v1122 = vpop.permute.xlu0 %1121
        %v1124 = vadd.f32 %v1116, %v1122
        %v1125 = vadd.f32 %v1117, %v1122
        %vm1126 = vcmp.gt.f32.partialorder %v1124, 0.0
        %vm1127 = vcmp.gt.f32.partialorder %v1125, 0.0
        %1128 = vset.pattern.permute.xlu0 3
        %1129 = vperm.xlu0 %1128, %v1118
        %v1130 = vpop.permute.xlu0 %1129
        %v1132 = vmul.f32 %v1124, %v1130
        %v1133 = vmul.f32 %v1125, %v1130
        %v1134 = vsel %vm1126, %v1124, %v1132
        %v1135 = vsel %vm1127, %v1125, %v1133
        %v1136 = vpack.c.bf16 %v1134, %v1134
        %v1137 = vpack.c.bf16 %v1135, %v1135
        %v1140 = vrot.slane %v756, 4
        %v1141 = vrot.slane %v757, 4
        %v1144 = vrot.slane %v1136, 4
        %v1145 = vrot.slane %v1137, 4
        %vm1146 = vcmask 1043456
        %v1149 = vsel %vm1146, %v566, %v1140
        %v1153 = vsel %vm1146, %v567, %v1141
        %v1157 = vsel %vm1146, %v946, %v1144
        %v1161 = vsel %vm1146, %v947, %v1145
        %v1163 = vld [vmem:[%s3] sm:$0xf]
        %v1164 = vld [vmem:[%s3 + $0x4] sm:$0xf]
        %v1165 = vld [vmem:[%s3 + $0x8] sm:$0xf]
        %v1166 = vld [vmem:[%s3 + $0xc] sm:$0xf]
        %v1171 = vunpack.c.l.b16 %v1163
        %v1172 = vunpack.c.l.b16 %v1164
        %v1173 = vunpack.c.l.b16 %v1165
        %v1174 = vunpack.c.l.b16 %v1166
        %v1175 = vpack.c.b16 %v1172, %v1171
        %v1176 = vpack.c.b16 %v1174, %v1173
        %v1178 = vsel %vm260, %v1175, 0
        %v1181 = vsel %vm260, %v1176, 0
        %1183 = vmatprep.subr.bf16.mxu0 0
        %1184 = vmatpush1.bf16.msra.mxu0 0
        %1185 = vmatprep.subr.bf16.mxu0 0
        %1186 = vmatpush1.bf16.msra.mxu0 0
        %1187 = vmatprep.subr.bf16.mxu0 0
        %1188 = vmatpush1.bf16.msra.mxu0 0
        %1189 = vmatprep.subr.bf16.mxu0 0
        %1190 = vmatpush1.bf16.msra.mxu0 0
        %1191 = vmatprep.subr.bf16.mxu0 0
        %1192 = vmatpush1.bf16.msra.mxu0 0
        %1193 = vmatprep.subr.bf16.mxu0 0
        %1194 = vmatpush1.bf16.msra.mxu0 0
        %1195 = vmatprep.subr.bf16.mxu0 %v1161
        %1196 = vmatpush1.bf16.msra.mxu0 %v1157
        %1197 = vmatprep.subr.bf16.mxu0 %v1153
        %1198 = vmatpush1.bf16.msra.mxu0 %v1149
        %1199 = vmatprep.subr.bf16.mxu0 0
        %1200 = vmatpush2.bf16.msra.mxu0 0
        %1201 = vmatprep.subr.bf16.mxu0 0
        %1202 = vmatpush2.bf16.msra.mxu0 0
        %1203 = vmatprep.subr.bf16.mxu0 0
        %1204 = vmatpush2.bf16.msra.mxu0 0
        %1205 = vmatprep.subr.bf16.mxu0 0
        %1206 = vmatpush2.bf16.msra.mxu0 0
        %1207 = vmatprep.subr.bf16.mxu0 0
        %1208 = vmatpush2.bf16.msra.mxu0 0
        %1209 = vmatprep.subr.bf16.mxu0 0
        %1210 = vmatpush2.bf16.msra.mxu0 0
        %1211 = vmatprep.subr.bf16.mxu0 0
        %1212 = vmatpush2.bf16.msra.mxu0 0
        %1213 = vmatprep.subr.bf16.mxu0 0
        %1214 = vmatpush2.bf16.msra.mxu0 0
        %1215 = vmatprep.mubr.bf16.mxu0 0
        %1216 = vmatmul.mubr.bf16.gmra.mxu0 %v1178
        %v1217 = vpop.f32.mrf.mxu0
        %v1218 = vadd.f32 0.0, %v1217
        %v1219 = vpop.f32.mrf.mxu0
        %v1220 = vadd.f32 0.0, %v1219
        %v1221 = vpop.f32.mrf.mxu0
        %v1222 = vadd.f32 0.0, %v1221
        %v1223 = vpop.f32.mrf.mxu0
        %v1224 = vadd.f32 0.0, %v1223
        %1225 = vmatprep.mubr.bf16.mxu0 0
        %1226 = vmatmul.mubr.bf16.gmra.mxu0 %v1181
        %v1227 = vpop.f32.mrf.mxu0
        %v1228 = vadd.f32 0.0, %v1227
        %v1229 = vpop.f32.mrf.mxu0
        %v1230 = vadd.f32 0.0, %v1229
        %v1231 = vpop.f32.mrf.mxu0
        %v1232 = vadd.f32 0.0, %v1231
        %v1233 = vpop.f32.mrf.mxu0
        %v1234 = vadd.f32 0.0, %v1233
        %1235 = vdwg.mxu0
        %v1236 = vld [vmem:[%s4] sm:$0xff]
        %v1237 = vld [vmem:[%s4 + $0x8] sm:$0xff]
        %v1238 = vld [vmem:[%s4 + $0x10] sm:$0xff]
        %1240 = vset.pattern.permute.xlu0 4
        %1241 = vperm.xlu0 %1240, %v1236
        %v1242 = vpop.permute.xlu0 %1241
        %1245 = vset.pattern.permute.xlu0 4
        %1246 = vperm.xlu0 %1245, %v1237
        %v1247 = vpop.permute.xlu0 %1246
        %1250 = vset.pattern.permute.xlu0 4
        %1251 = vperm.xlu0 %1250, %v1238
        %v1252 = vpop.permute.xlu0 %1251
        %1254 = vset.pattern.permute.xlu0 4
        %1255 = vperm.xlu0 %1254, %v1118
        %v1256 = vpop.permute.xlu0 %1255
        %v1258 = vmul.f32 %v1218, %v1242
        %v1259 = vmul.f32 %v1220, %v1242
        %v1260 = vmul.f32 %v1222, %v1247
        %v1261 = vmul.f32 %v1224, %v1247
        %v1262 = vmul.f32 %v1228, %v1252
        %v1263 = vmul.f32 %v1230, %v1252
        %v1264 = vmul.f32 %v1232, %v1256
        %v1265 = vmul.f32 %v1234, %v1256
        %1266 = vset.pattern.permute.xlu0 5
        %1267 = vperm.xlu0 %1266, %v1236
        %v1268 = vpop.permute.xlu0 %1267
        %1270 = vset.pattern.permute.xlu0 5
        %1271 = vperm.xlu0 %1270, %v1237
        %v1272 = vpop.permute.xlu0 %1271
        %1274 = vset.pattern.permute.xlu0 5
        %1275 = vperm.xlu0 %1274, %v1238
        %v1276 = vpop.permute.xlu0 %1275
        %1278 = vset.pattern.permute.xlu0 5
        %1279 = vperm.xlu0 %1278, %v1118
        %v1280 = vpop.permute.xlu0 %1279
        %v1282 = vadd.f32 %v1258, %v1268
        %v1283 = vadd.f32 %v1259, %v1268
        %v1284 = vadd.f32 %v1260, %v1272
        %v1285 = vadd.f32 %v1261, %v1272
        %v1286 = vadd.f32 %v1262, %v1276
        %v1287 = vadd.f32 %v1263, %v1276
        %v1288 = vadd.f32 %v1264, %v1280
        %v1289 = vadd.f32 %v1265, %v1280
        %v1290 = vadd.f32 %v1282, %v242
        %v1291 = vadd.f32 %v1283, %v243
        %v1292 = vadd.f32 %v1284, %v244
        %v1293 = vadd.f32 %v1285, %v245
        %v1294 = vadd.f32 %v1286, %v246
        %v1295 = vadd.f32 %v1287, %v247
        %v1296 = vadd.f32 %v1288, %v248
        %v1297 = vadd.f32 %v1289, %v249
        %vm1298 = vcmp.gt.f32.partialorder %v1290, 0.0
        %vm1299 = vcmp.gt.f32.partialorder %v1291, 0.0
        %vm1300 = vcmp.gt.f32.partialorder %v1292, 0.0
        %vm1301 = vcmp.gt.f32.partialorder %v1293, 0.0
        %vm1302 = vcmp.gt.f32.partialorder %v1294, 0.0
        %vm1303 = vcmp.gt.f32.partialorder %v1295, 0.0
        %vm1304 = vcmp.gt.f32.partialorder %v1296, 0.0
        %vm1305 = vcmp.gt.f32.partialorder %v1297, 0.0
        %1306 = vset.pattern.permute.xlu0 6
        %1307 = vperm.xlu0 %1306, %v1236
        %v1308 = vpop.permute.xlu0 %1307
        %1310 = vset.pattern.permute.xlu0 6
        %1311 = vperm.xlu0 %1310, %v1237
        %v1312 = vpop.permute.xlu0 %1311
        %1314 = vset.pattern.permute.xlu0 6
        %1315 = vperm.xlu0 %1314, %v1238
        %v1316 = vpop.permute.xlu0 %1315
        %1318 = vset.pattern.permute.xlu0 6
        %1319 = vperm.xlu0 %1318, %v1118
        %v1320 = vpop.permute.xlu0 %1319
        %v1322 = vmul.f32 %v1290, %v1308
        %v1323 = vmul.f32 %v1291, %v1308
        %v1324 = vmul.f32 %v1292, %v1312
        %v1325 = vmul.f32 %v1293, %v1312
        %v1326 = vmul.f32 %v1294, %v1316
        %v1327 = vmul.f32 %v1295, %v1316
        %v1328 = vmul.f32 %v1296, %v1320
        %v1329 = vmul.f32 %v1297, %v1320
        %v1330 = vsel %vm1298, %v1290, %v1322
        %v1331 = vsel %vm1299, %v1291, %v1323
        %v1332 = vsel %vm1300, %v1292, %v1324
        %v1333 = vsel %vm1301, %v1293, %v1325
        %v1334 = vsel %vm1302, %v1294, %v1326
        %v1335 = vsel %vm1303, %v1295, %v1327
        %v1336 = vsel %vm1304, %v1296, %v1328
        %v1337 = vsel %vm1305, %v1297, %v1329
        %1338 = vst [vmem:[%s239] sm:$0xff] %v1330
        %1339 = vst [vmem:[%s239 + $0x8] sm:$0xff] %v1331
        %1340 = vst [vmem:[%s239 + $0x10] sm:$0xff] %v1332
        %1341 = vst [vmem:[%s239 + $0x18] sm:$0xff] %v1333
        %1342 = vst [vmem:[%s239 + $0x20] sm:$0xff] %v1334
        %1343 = vst [vmem:[%s239 + $0x28] sm:$0xff] %v1335
        %1344 = vst [vmem:[%s239 + $0x30] sm:$0xff] %v1336
        %1345 = vst [vmem:[%s239 + $0x38] sm:$0xff] %v1337
        %p1346 = scmp.lt.s32.totalorder %s17, 1
        %s1347 = scalar_select %p1346, %s17, 1
        %s1348 = smul.addr %s1347, 8
        %s1349 = smul.addr %s1348, 8
        %s1350 = scalar_lea.vmem %s5, %s1349
        // Predicated region
        $region45: #{sesp_forward.1} parent=39 // pred_check
          %p1351 = pneg %p145
        $region46: #{sesp_forward.1} parent=39 // pred_check_branch
          %1353 = sbr.rel (%p1351) target = $region48
        $region47: #{sesp_forward.1} parent=39 // pred_region
          _
        $region48: #{sesp_forward.1} parent=39 // pred_fallthru
          _
      $region40: #{sesp_forward.1} parent=5 // pred_fallthru
        _
      %p1354 = scmp.le.s32.totalorder 2, %s12
      // Predicated region
      $region49: #{sesp_forward.1} parent=5 // pred_check
        %p1355 = pneg %p1354
      $region50: #{sesp_forward.1} parent=5 // pred_check_branch
        %1357 = sbr.rel (%p1355) target = $region52
      $region51: #{sesp_forward.1} parent=5 // pred_region
        %s1358 = ssub.s32 %s12, 2
        // Predicated region
        $region53: #{sesp_forward.1} parent=51 // pred_check
          %p1359 = pneg %p151
        $region54: #{sesp_forward.1} parent=51 // pred_check_branch
          %1361 = sbr.rel (%p1359) target = $region56
        $region55: #{sesp_forward.1} parent=51 // pred_region
          %p1362 = scmp.lt.s32.totalorder %s18, 1
          %s1363 = scalar_select %p1362, %s18, 1
          %s1364 = smul.addr %s1363, 8
          %s1365 = smul.addr %s1364, 8
          %s1366 = scalar_lea.vmem %s5, %s1365
        $region56: #{sesp_forward.1} parent=51 // pred_fallthru
          _
      $region52: #{sesp_forward.1} parent=5 // pred_fallthru
        _
    $region6: #{sesp_forward.1} parent=1 // loop_footer
      %s16 = sadd.s32 1, %s12
    $region7: #{sesp_forward.1} parent=1 // loop_footer_branch
      %11 = sbr.rel target = $region3
    $region8: #{sesp_forward.1} parent=1 // loop_exit
      _
    %1367 = vsyncpa [#allocation3], 1
    %s1368 = scalar_lea.sflag [#allocation3], 1
    %1369 = vsyncpa %s1368, 1

</llo_original>
